<compile_context>
chip_gen: v7x
topology: tpu7x:2x2x1
jax: 0.10.0
libtpu: 0.0.40
codegen_flags: <defaults>
</compile_context>

<pallas_src>
import math
from functools import partial

import jax
import jax.numpy as jnp
from jax.experimental import pallas as pl
from jax.experimental.pallas import tpu as pltpu

# ---- LidarLoss / DepthLoss / LineOfSightLoss module defaults ----
MASK_PRED_THRESH = 1e-7
DISCARD_OUTLIERS_MEDIAN = 100.0
W_DEPTH = 1.0
W_LOS = 1.0
SIGMA = 1.0
SIGMA_SCALE_FACTOR = 3.0
_LOS_STD = SIGMA / SIGMA_SCALE_FACTOR
_LOS_INV_STD = 1.0 / _LOS_STD
_LOS_INV_NORM = 1.0 / (_LOS_STD * math.sqrt(2.0 * math.pi))

_LANES = 128
# Explicit scoped-VMEM budget. With the caps below the double-buffered working set is
# ~6 MiB (depth: 3 f32 inputs x 2 bufs x 1024x128) / ~8-10 MiB (LoS), well under 32 MiB.
# Keep <= ~48 MiB so the same tiling fits v7x's 64 MiB physical VMEM.
_VMEM_LIMIT = 32 * 1024 * 1024


def _round_up(x: int, m: int) -> int:
    return ((x + m - 1) // m) * m


def _pick_row_tile(rows: int, cap: int = 1024) -> int:
    """Largest 8*2^k row tile <= cap that still leaves >=2 grid tiles (when rows allow).

    Big tiles amortize the ~0.35us/step overhead and keep DMAs near peak HBM BW; >=2
    tiles lets v7x megacore-shard the "parallel" grid. The last tile may be partial
    (ragged rows are masked in-kernel)."""
    rows8 = _round_up(max(rows, 1), 8)
    tr = 8
    while tr * 2 <= cap and tr * 2 <= rows8:
        tr *= 2
    return tr


def _los_row_cap(k_pad: int) -> int:
    # ~4 MiB per (rows, Kp) f32 tile; bounded so 2 inputs x 2 buffers stay well under VMEM.
    by_bytes = (4 << 20) // max(k_pad * 4, 1)
    return max(8, min(2048, by_bytes))


def _compiler_params():
    return pltpu.CompilerParams(
        dimension_semantics=("parallel",),   # independent row tiles -> megacore-shardable
        vmem_limit_bytes=_VMEM_LIMIT,
    )


# ----------------------------------------------------------------------------
# Kernel 1: masked L1 depth error (the only input to the global median).
#   err = |pred - gt| * ((mask_pred > thresh) & (gt > 0))
# No row masking needed: writes past the array bounds of a ragged last block are dropped,
# and in-bounds lane pads (zeros) produce err = 0.
# ----------------------------------------------------------------------------
def _err_kernel(pred_ref, gt_ref, mpred_ref, err_ref):
    pred = pred_ref[...].astype(jnp.float32)
    gt = gt_ref[...].astype(jnp.float32)
    mpred = mpred_ref[...].astype(jnp.float32)
    mask = jnp.logical_and(mpred > MASK_PRED_THRESH, gt > 0.0).astype(jnp.float32)
    err_ref[...] = jnp.abs(pred - gt) * mask


def _call_err(pred2d, gt2d, mpred2d, tr):
    R, C = pred2d.shape
    nt = pl.cdiv(R, tr)
    tile = pl.BlockSpec((tr, C), lambda i: (i, 0))
    return pl.pallas_call(
        _err_kernel,
        out_shape=jax.ShapeDtypeStruct((R, C), jnp.float32),
        grid=(nt,),
        in_specs=[tile, tile, tile],
        out_specs=pl.BlockSpec((tr, C), lambda i: (i, 0)),
        compiler_params=_compiler_params(),
    )(pred2d, gt2d, mpred2d)


# ----------------------------------------------------------------------------
# Kernel 2: median outlier rejection + masked l1_log depth loss.
# mask/err recomputed in-register (no HBM round-trip); single log per element.
# Each tile writes lane-dense (8, C) partial-sum blocks (row 0 meaningful, rows 1-7 are
# redundant broadcast copies); the wrapper reduces row 0 of each block.
# Rows of a ragged last block (undefined DMA padding) are zeroed with a row-validity mask.
# ----------------------------------------------------------------------------
def _depth_loss_kernel(rows, tr, med_ref, pred_ref, gt_ref, mpred_ref, loss_ref, cnt_ref):
    median = med_ref[0]                                   # scalar in SMEM
    pred = pred_ref[...].astype(jnp.float32)
    gt = gt_ref[...].astype(jnp.float32)
    mpred = mpred_ref[...].astype(jnp.float32)

    mask = jnp.logical_and(mpred > MASK_PRED_THRESH, gt > 0.0).astype(jnp.float32)
    err = jnp.abs(pred - gt) * mask
    keep = (err <= median * DISCARD_OUTLIERS_MEDIAN).astype(jnp.float32)
    fmask = mask * keep
    # single-transcendental form of |log(pred+1) - log(gt+1)| (exact divide)
    loss = jnp.abs(jnp.log((pred + 1.0) / (gt + 1.0))) * fmask

    row = jax.lax.broadcasted_iota(jnp.int32, pred.shape, 0) + pl.program_id(0) * tr
    valid = row < rows
    loss = jnp.where(valid, loss, 0.0)
    fmask = jnp.where(valid, fmask, 0.0)

    loss_ref[...] = jnp.broadcast_to(jnp.sum(loss, axis=0, keepdims=True), loss_ref.shape)
    cnt_ref[...] = jnp.broadcast_to(jnp.sum(fmask, axis=0, keepdims=True), cnt_ref.shape)


def _call_depth_loss(median1, pred2d, gt2d, mpred2d, tr):
    R, C = pred2d.shape
    nt = pl.cdiv(R, tr)
    tile = pl.BlockSpec((tr, C), lambda i: (i, 0))
    part = pl.BlockSpec((8, C), lambda i: (i, 0))
    smem = pl.BlockSpec(memory_space=pltpu.MemorySpace.SMEM)
    return pl.pallas_call(
        partial(_depth_loss_kernel, R, tr),
        out_shape=(
            jax.ShapeDtypeStruct((nt * 8, C), jnp.float32),
            jax.ShapeDtypeStruct((nt * 8, C), jnp.float32),
        ),
        grid=(nt,),
        in_specs=[smem, tile, tile, tile],
        out_specs=(part, part),
        compiler_params=_compiler_params(),
    )(median1, pred2d, gt2d, mpred2d)


# ----------------------------------------------------------------------------
# Kernel 3: line-of-sight loss ('nerf', batched buffer), per-tile partial sums.
# The per-ray gt and final mask are wrapper-computed (Nhit-sized, trivial), so the kernel
# streams only the two big (Nhit, K) arrays plus two narrow columns.
# ----------------------------------------------------------------------------
def _los_kernel(n_hit, trh, t_ref, vw_ref, gt_ref, m_ref, n_out_ref, e_out_ref):
    t = t_ref[...].astype(jnp.float32)          # (trh, Kp)
    vw = vw_ref[...].astype(jnp.float32)        # (trh, Kp)
    gt = gt_ref[...].astype(jnp.float32)        # (trh, 1)
    m = m_ref[...].astype(jnp.float32)          # (trh, 1) final per-hit mask

    diff = t - gt                               # implicit (trh,1)->(trh,Kp) broadcast (used once)
    z = diff * _LOS_INV_STD
    pdf = _LOS_INV_NORM * jnp.exp(-0.5 * z * z)
    m_b = jnp.broadcast_to(m, t.shape)          # hoisted: one broadcast, reused by both terms
    neighbor = jnp.where(jnp.abs(diff) <= SIGMA, (vw - pdf) ** 2, 0.0) * m_b
    empty = jnp.where(diff < -SIGMA, vw * vw, 0.0) * m_b

    row = jax.lax.broadcasted_iota(jnp.int32, t.shape, 0) + pl.program_id(0) * trh
    valid = row < n_hit                         # ragged last tile -> undefined rows zeroed
    neighbor = jnp.where(valid, neighbor, 0.0)
    empty = jnp.where(valid, empty, 0.0)

    n_out_ref[...] = jnp.broadcast_to(jnp.sum(neighbor, axis=0, keepdims=True), n_out_ref.shape)
    e_out_ref[...] = jnp.broadcast_to(jnp.sum(empty, axis=0, keepdims=True), e_out_ref.shape)


def _call_los(t2d, vw2d, gt_hit, mask_hit, trh):
    H, Kp = t2d.shape
    nt = pl.cdiv(H, trh)
    big = pl.BlockSpec((trh, Kp), lambda i: (i, 0))
    col = pl.BlockSpec((trh, 1), lambda i: (i, 0))
    part = pl.BlockSpec((8, Kp), lambda i: (i, 0))
    return pl.pallas_call(
        partial(_los_kernel, H, trh),
        out_shape=(
            jax.ShapeDtypeStruct((nt * 8, Kp), jnp.float32),
            jax.ShapeDtypeStruct((nt * 8, Kp), jnp.float32),
        ),
        grid=(nt,),
        in_specs=[big, big, col, col],
        out_specs=(part, part),
        compiler_params=_compiler_params(),
    )(t2d, vw2d, gt_hit, mask_hit)


# ----------------------------------------------------------------------------
# LidarLoss.forward
# ----------------------------------------------------------------------------
@jax.jit
def lidar_loss(depth_pred, depth_gt, mask_pred, t_samples, vw, ray_inds_hit):
    """depth_pred/depth_gt/mask_pred: flat (N,) rays; t_samples/vw: (Nhit, K);
    ray_inds_hit: (Nhit,) int32 indices into the flat ray axis."""
    N = depth_pred.size
    C = _LANES
    zero = jnp.float32(0.0)

    if N == 0:
        depth_loss = zero
        median = zero
    else:
        # ---- depth arrays: flat (N,) -> (R, 128), row tiled; ragged last tile masked in-kernel ----
        R = -(-N // C)
        if N % C == 0:
            R_rows, pad_total = R, 0
        else:
            # Only lane padding is unavoidable (a flat N can't reshape to 128 lanes otherwise);
            # while paying that copy, also round rows to a multiple of 8.
            # TODO(synk): accept pre-staged 2-D (rows, 128) inputs to skip even this copy.
            R_rows = _round_up(R, 8)
            pad_total = R_rows * C - N

        def to2d(x):
            x = x.reshape(-1)
            if pad_total:
                x = jnp.pad(x, (0, pad_total))       # pads have gt=0 -> masked out
            return x.reshape(R_rows, C)

        pred2d, gt2d, mpred2d = to2d(depth_pred), to2d(depth_gt), to2d(mask_pred)
        tr = _pick_row_tile(R_rows)

        # Kernel 1: masked L1 error (only used to form the global median).
        err2d = _call_err(pred2d, gt2d, mpred2d, tr)

        # Exact median over the N real beams, matching the torch sort_values[numel() // 2].
        # The pad_total zero entries are <= every err, so they shift every order statistic
        # by exactly pad_total -> no [:N] slice copy needed.
        # TODO(synk): for very large N replace the O(N log N) sort with a 2-pass bit-pattern
        # histogram select; kept as an exact jnp.sort to preserve the reference semantics.
        median = jnp.sort(err2d.reshape(-1))[pad_total + N // 2].astype(jnp.float32)
        median1 = median.reshape(1)

        # Kernel 2: outlier rejection + masked l1_log depth loss (per-tile partials).
        loss_part, cnt_part = _call_depth_loss(median1, pred2d, gt2d, mpred2d, tr)
        nt = loss_part.shape[0] // 8
        sum_loss = jnp.sum(loss_part.reshape(nt, 8, C)[:, 0, :])
        sum_cnt = jnp.sum(cnt_part.reshape(nt, 8, C)[:, 0, :])
        depth_loss = sum_loss / jnp.maximum(sum_cnt, 1.0)

    # ---- line-of-sight ('nerf', batched buffer) ----
    n_hit, K = t_samples.shape
    if n_hit == 0 or N == 0:
        neighbor_loss = zero
        empty_loss = zero
    else:
        # Per-ray gathers + final mask stay in plain JAX (Nhit-sized, trivial): this drops
        # the pred/mask_pred columns and the SMEM median from the LoS kernel.
        pred_hit = jnp.take(depth_pred.reshape(-1), ray_inds_hit).astype(jnp.float32)
        gt_hit = jnp.take(depth_gt.reshape(-1), ray_inds_hit).astype(jnp.float32)
        mpred_hit = jnp.take(mask_pred.reshape(-1), ray_inds_hit).astype(jnp.float32)
        base_hit = jnp.logical_and(mpred_hit > MASK_PRED_THRESH, gt_hit > 0.0)
        err_hit = jnp.abs(pred_hit - gt_hit) * base_hit.astype(jnp.float32)
        mask_hit = jnp.logical_and(base_hit, err_hit <= median * DISCARD_OUTLIERS_MEDIAN)
        mask_hit = mask_hit.astype(jnp.float32).reshape(-1, 1)
        gt_hit = gt_hit.reshape(-1, 1)

        # Keep partial-sum outputs lane-dense: pad K up to a 128 multiple only if needed.
        # t pads at +1e30 and vw pads at 0 contribute nothing to either LoS term.
        Kp = _round_up(K, C)
        if Kp != K:
            t2d = jnp.pad(t_samples, ((0, 0), (0, Kp - K)), constant_values=1e30)
            vw2d = jnp.pad(vw, ((0, 0), (0, Kp - K)))
        else:
            t2d, vw2d = t_samples, vw

        trh = _pick_row_tile(n_hit, cap=_los_row_cap(Kp))
        n_part, e_part = _call_los(t2d, vw2d, gt_hit, mask_hit, trh)
        nth = n_part.shape[0] // 8
        neighbor_loss = jnp.sum(n_part.reshape(nth, 8, Kp)[:, 0, :]) / n_hit
        empty_loss = jnp.sum(e_part.reshape(nth, 8, Kp)[:, 0, :]) / n_hit

    return {
        'lidar_loss.depth': W_DEPTH * depth_loss,
        'lidar_loss.los.neighbor': W_LOS * neighbor_loss,
        'lidar_loss.los.empty': W_LOS * empty_loss,
    }


# ----------------------------------------------------------------------------
# Pure-JAX reference (mirrors the PyTorch forward) for a correctness check.
# ----------------------------------------------------------------------------
def _reference_lidar_loss(depth_pred, depth_gt, mask_pred, t_samples, vw, ray_inds_hit):
    depth_pred = depth_pred.astype(jnp.float32)
    depth_gt = depth_gt.astype(jnp.float32)
    mask_pred = mask_pred.astype(jnp.float32)
    N = depth_pred.size
    mask = (mask_pred > MASK_PRED_THRESH) & (depth_gt > 0.0)
    err = jnp.abs(depth_pred - depth_gt) * mask
    median = jnp.sort(err)[N // 2]
    mask = mask & (err <= median * DISCARD_OUTLIERS_MEDIAN)
    m = mask.astype(jnp.float32)
    loss = jnp.abs(jnp.log(depth_pred + 1.0) - jnp.log(depth_gt + 1.0)) * m
    depth_loss = loss.sum() / jnp.maximum(m.sum(), 1.0)

    gt_hit = depth_gt[ray_inds_hit][:, None]
    m_hit = m[ray_inds_hit][:, None]
    diff = t_samples.astype(jnp.float32) - gt_hit
    pdf = _LOS_INV_NORM * jnp.exp(-0.5 * (diff * _LOS_INV_STD) ** 2)
    vw32 = vw.astype(jnp.float32)
    nl = jnp.where(jnp.abs(diff) <= SIGMA, (vw32 - pdf) ** 2, 0.0).sum(-1, keepdims=True)
    el = jnp.where(diff < -SIGMA, vw32 ** 2, 0.0).sum(-1, keepdims=True)
    return {
        'lidar_loss.depth': W_DEPTH * depth_loss,
        'lidar_loss.los.neighbor': W_LOS * (nl * m_hit).mean(),
        'lidar_loss.los.empty': W_LOS * (el * m_hit).mean(),
    }


if __name__ == "__main__":
    key = jax.random.PRNGKey(0)
    k1, k2, k3, k4, k5, k6, k7, k8 = jax.random.split(key, 8)

    # Small but ragged shapes: N not a multiple of 128 (lane-pad + ragged row tiles) and
    # Nhit not a multiple of the row tile (ragged last LoS block handled in-kernel).
    N = 9000       # lidar beams -> (72, 128) layout, 64-row tiles with a partial last tile
    NHIT = 100     # rays with volume-buffer hits -> 64-row tiles, partial last tile
    K = 128        # depth samples per hit ray

    depth_gt = jax.random.uniform(k1, (N,), minval=0.5, maxval=50.0)
    zero_ret = jax.random.bernoulli(k6, 0.1, (N,))        # invalid (zero-range) returns
    depth_gt = jnp.where(zero_ret, 0.0, depth_gt)
    outlier = jax.random.bernoulli(k8, 0.01, (N,))        # a few GT outliers to reject
    depth_gt = jnp.where(outlier, 400.0, depth_gt)
    depth_pred = jnp.clip(depth_gt + jax.random.normal(k2, (N,)) * 0.5, 0.1, 60.0)
    mask_pred = jax.random.uniform(k3, (N,), minval=0.0, maxval=1.0)

    ray_inds_hit = jax.random.permutation(k4, N)[:NHIT].astype(jnp.int32)
    t_samples = jax.random.uniform(k5, (NHIT, K), minval=0.0, maxval=60.0)
    vw = jax.random.uniform(k7, (NHIT, K), minval=0.0, maxval=0.05)

    losses = lidar_loss(depth_pred, depth_gt, mask_pred, t_samples, vw, ray_inds_hit)
    losses = jax.block_until_ready(losses)

    ref = _reference_lidar_loss(depth_pred, depth_gt, mask_pred, t_samples, vw, ray_inds_hit)
    for name, val in losses.items():
        assert jnp.isfinite(val), f"non-finite loss: {name}"
        assert jnp.allclose(val, ref[name], rtol=1e-4, atol=1e-6), (
            name, float(val), float(ref[name]))
    print("KERNEL_OK")
</pallas_src>

<mosaic_0001>
module attributes {stable_mosaic.version = 11 : i64} {
  func.func @_err_kernel(%arg0: i32, %arg1: memref<64x128xf32, #tpu.memory_space<vmem>>, %arg2: memref<64x128xf32, #tpu.memory_space<vmem>>, %arg3: memref<64x128xf32, #tpu.memory_space<vmem>>, %arg4: memref<64x128xf32, #tpu.memory_space<vmem>>) attributes {dimension_semantics = [#tpu.dimension_semantics<parallel>], iteration_bounds = array<i64: 2>, scalar_prefetch = 0 : i64, scratch_operands = 0 : i64, tpu.core_type = #tpu.core_type<tc>, window_params = [{transform_indices = @transform_0, window_bounds = array<i64: 64, 128>}, {transform_indices = @transform_1, window_bounds = array<i64: 64, 128>}, {transform_indices = @transform_2, window_bounds = array<i64: 64, 128>}, {transform_indices = @transform_3, window_bounds = array<i64: 64, 128>}]} {
    %c0 = arith.constant 0 : index
    %c0_0 = arith.constant 0 : index
    %0 = vector.load %arg1[%c0, %c0_0] : memref<64x128xf32, #tpu.memory_space<vmem>>, vector<64x128xf32>
    %c0_1 = arith.constant 0 : index
    %c0_2 = arith.constant 0 : index
    %1 = vector.load %arg2[%c0_1, %c0_2] : memref<64x128xf32, #tpu.memory_space<vmem>>, vector<64x128xf32>
    %c0_3 = arith.constant 0 : index
    %c0_4 = arith.constant 0 : index
    %2 = vector.load %arg3[%c0_3, %c0_4] : memref<64x128xf32, #tpu.memory_space<vmem>>, vector<64x128xf32>
    %cst = arith.constant 1.000000e-07 : f32
    %3 = vector.broadcast %cst : f32 to vector<64x128xf32>
    %4 = arith.cmpf ogt, %2, %3 : vector<64x128xf32>
    %cst_5 = arith.constant 0.000000e+00 : f32
    %5 = vector.broadcast %cst_5 : f32 to vector<64x128xf32>
    %6 = arith.cmpf ogt, %1, %5 : vector<64x128xf32>
    %7 = arith.andi %4, %6 : vector<64x128xi1>
    %8 = arith.extui %7 : vector<64x128xi1> to vector<64x128xi32>
    %9 = arith.sitofp %8 : vector<64x128xi32> to vector<64x128xf32>
    %10 = arith.subf %0, %1 : vector<64x128xf32>
    %11 = math.absf %10 : vector<64x128xf32>
    %12 = arith.mulf %11, %9 : vector<64x128xf32>
    %c0_6 = arith.constant 0 : index
    %c0_7 = arith.constant 0 : index
    %13 = vector.load %arg4[%c0_6, %c0_7] : memref<64x128xf32, #tpu.memory_space<vmem>>, vector<64x128xf32>
    tpu.vector_store %arg4[%c0_6, %c0_7], %12 {strides = array<i32>} : memref<64x128xf32, #tpu.memory_space<vmem>>, vector<64x128xf32>,
    return
  }
  func.func @transform_0(%arg0: i32) -> (i32, i32) {
    %c0_i32 = arith.constant 0 : i32
    %c0_i32_0 = arith.constant 0 : i32
    return %arg0, %c0_i32 : i32, i32
  }
  func.func @transform_1(%arg0: i32) -> (i32, i32) {
    %c0_i32 = arith.constant 0 : i32
    %c0_i32_0 = arith.constant 0 : i32
    return %arg0, %c0_i32 : i32, i32
  }
  func.func @transform_2(%arg0: i32) -> (i32, i32) {
    %c0_i32 = arith.constant 0 : i32
    %c0_i32_0 = arith.constant 0 : i32
    return %arg0, %c0_i32 : i32, i32
  }
  func.func @transform_3(%arg0: i32) -> (i32, i32) {
    %c0_i32 = arith.constant 0 : i32
    %c0_i32_0 = arith.constant 0 : i32
    return %arg0, %c0_i32 : i32, i32
  }
}

module attributes {stable_mosaic.version = 11 : i64} {
  func.func @_depth_loss_kernel(%arg0: i32, %arg1: memref<1xf32, #tpu.memory_space<smem>>, %arg2: memref<64x128xf32, #tpu.memory_space<vmem>>, %arg3: memref<64x128xf32, #tpu.memory_space<vmem>>, %arg4: memref<64x128xf32, #tpu.memory_space<vmem>>, %arg5: memref<8x128xf32, #tpu.memory_space<vmem>>, %arg6: memref<8x128xf32, #tpu.memory_space<vmem>>) attributes {dimension_semantics = [#tpu.dimension_semantics<parallel>], iteration_bounds = array<i64: 2>, scalar_prefetch = 0 : i64, scratch_operands = 0 : i64, tpu.core_type = #tpu.core_type<tc>, window_params = [{transform_indices = @transform_0, window_bounds = array<i64: 1>}, {transform_indices = @transform_1, window_bounds = array<i64: 64, 128>}, {transform_indices = @transform_2, window_bounds = array<i64: 64, 128>}, {transform_indices = @transform_3, window_bounds = array<i64: 64, 128>}, {transform_indices = @transform_4, window_bounds = array<i64: 8, 128>}, {transform_indices = @transform_5, window_bounds = array<i64: 8, 128>}]} {
    %c0 = arith.constant 0 : index
    %0 = memref.load %arg1[%c0] : memref<1xf32, #tpu.memory_space<smem>>
    %c0_0 = arith.constant 0 : index
    %c0_1 = arith.constant 0 : index
    %1 = vector.load %arg2[%c0_0, %c0_1] : memref<64x128xf32, #tpu.memory_space<vmem>>, vector<64x128xf32>
    %c0_2 = arith.constant 0 : index
    %c0_3 = arith.constant 0 : index
    %2 = vector.load %arg3[%c0_2, %c0_3] : memref<64x128xf32, #tpu.memory_space<vmem>>, vector<64x128xf32>
    %c0_4 = arith.constant 0 : index
    %c0_5 = arith.constant 0 : index
    %3 = vector.load %arg4[%c0_4, %c0_5] : memref<64x128xf32, #tpu.memory_space<vmem>>, vector<64x128xf32>
    %cst = arith.constant 1.000000e-07 : f32
    %4 = vector.broadcast %cst : f32 to vector<64x128xf32>
    %5 = arith.cmpf ogt, %3, %4 : vector<64x128xf32>
    %cst_6 = arith.constant 0.000000e+00 : f32
    %6 = vector.broadcast %cst_6 : f32 to vector<64x128xf32>
    %7 = arith.cmpf ogt, %2, %6 : vector<64x128xf32>
    %8 = arith.andi %5, %7 : vector<64x128xi1>
    %9 = arith.extui %8 : vector<64x128xi1> to vector<64x128xi32>
    %10 = arith.sitofp %9 : vector<64x128xi32> to vector<64x128xf32>
    %11 = arith.subf %1, %2 : vector<64x128xf32>
    %12 = math.absf %11 : vector<64x128xf32>
    %13 = arith.mulf %12, %10 : vector<64x128xf32>
    %cst_7 = arith.constant 1.000000e+02 : f32
    %14 = arith.mulf %0, %cst_7 : f32
    %15 = vector.broadcast %14 : f32 to vector<64x128xf32>
    %16 = arith.cmpf ole, %13, %15 : vector<64x128xf32>
    %17 = arith.extui %16 : vector<64x128xi1> to vector<64x128xi32>
    %18 = arith.sitofp %17 : vector<64x128xi32> to vector<64x128xf32>
    %19 = arith.mulf %10, %18 : vector<64x128xf32>
    %cst_8 = arith.constant 1.000000e+00 : f32
    %20 = vector.broadcast %cst_8 : f32 to vector<64x128xf32>
    %21 = arith.addf %1, %20 : vector<64x128xf32>
    %cst_9 = arith.constant 1.000000e+00 : f32
    %22 = vector.broadcast %cst_9 : f32 to vector<64x128xf32>
    %23 = arith.addf %2, %22 : vector<64x128xf32>
    %24 = arith.divf %21, %23 : vector<64x128xf32>
    %25 = math.log %24 : vector<64x128xf32>
    %26 = math.absf %25 : vector<64x128xf32>
    %27 = arith.mulf %26, %19 : vector<64x128xf32>
    %28 = tpu.iota {dimensions = array<i32: 0>} : vector<64x128xi32>
    %c64_i32 = arith.constant 64 : i32
    %29 = arith.muli %arg0, %c64_i32 : i32
    %30 = vector.broadcast %29 : i32 to vector<64x128xi32>
    %31 = arith.addi %28, %30 : vector<64x128xi32>
    %c72_i32 = arith.constant 72 : i32
    %32 = vector.broadcast %c72_i32 : i32 to vector<64x128xi32>
    %33 = arith.cmpi slt, %31, %32 : vector<64x128xi32>
    %cst_10 = arith.constant 0.000000e+00 : f32
    %34 = vector.broadcast %cst_10 : f32 to vector<64x128xf32>
    %35 = arith.select %33, %27, %34 : vector<64x128xi1>, vector<64x128xf32>
    %cst_11 = arith.constant 0.000000e+00 : f32
    %36 = vector.broadcast %cst_11 : f32 to vector<64x128xf32>
    %37 = arith.select %33, %19, %36 : vector<64x128xi1>, vector<64x128xf32>
    %cst_12 = arith.constant dense<0.000000e+00> : vector<128xf32>
    %38 = vector.multi_reduction <add>, %35, %cst_12 [0] : vector<64x128xf32> to vector<128xf32>
    %39 = vector.shape_cast %38 : vector<128xf32> to vector<1x128xf32>
    %40 = vector.shape_cast %39 : vector<1x128xf32> to vector<1x128xf32>
    %41 = vector.broadcast %40 : vector<1x128xf32> to vector<8x128xf32>
    %c0_13 = arith.constant 0 : index
    %c0_14 = arith.constant 0 : index
    %42 = vector.load %arg5[%c0_13, %c0_14] : memref<8x128xf32, #tpu.memory_space<vmem>>, vector<8x128xf32>
    tpu.vector_store %arg5[%c0_13, %c0_14], %41 {strides = array<i32>} : memref<8x128xf32, #tpu.memory_space<vmem>>, vector<8x128xf32>,
    %cst_15 = arith.constant dense<0.000000e+00> : vector<128xf32>
    %43 = vector.multi_reduction <add>, %37, %cst_15 [0] : vector<64x128xf32> to vector<128xf32>
    %44 = vector.shape_cast %43 : vector<128xf32> to vector<1x128xf32>
    %45 = vector.shape_cast %44 : vector<1x128xf32> to vector<1x128xf32>
    %46 = vector.broadcast %45 : vector<1x128xf32> to vector<8x128xf32>
    %c0_16 = arith.constant 0 : index
    %c0_17 = arith.constant 0 : index
    %47 = vector.load %arg6[%c0_16, %c0_17] : memref<8x128xf32, #tpu.memory_space<vmem>>, vector<8x128xf32>
    tpu.vector_store %arg6[%c0_16, %c0_17], %46 {strides = array<i32>} : memref<8x128xf32, #tpu.memory_space<vmem>>, vector<8x128xf32>,
    return
  }
  func.func @transform_0(%arg0: i32) -> i32 {
    %c0_i32 = arith.constant 0 : i32
    %c0_i32_0 = arith.constant 0 : i32
    return %c0_i32 : i32
  }
  func.func @transform_1(%arg0: i32) -> (i32, i32) {
    %c0_i32 = arith.constant 0 : i32
    %c0_i32_0 = arith.constant 0 : i32
    return %arg0, %c0_i32 : i32, i32
  }
  func.func @transform_2(%arg0: i32) -> (i32, i32) {
    %c0_i32 = arith.constant 0 : i32
    %c0_i32_0 = arith.constant 0 : i32
    return %arg0, %c0_i32 : i32, i32
  }
  func.func @transform_3(%arg0: i32) -> (i32, i32) {
    %c0_i32 = arith.constant 0 : i32
    %c0_i32_0 = arith.constant 0 : i32
    return %arg0, %c0_i32 : i32, i32
  }
  func.func @transform_4(%arg0: i32) -> (i32, i32) {
    %c0_i32 = arith.constant 0 : i32
    %c0_i32_0 = arith.constant 0 : i32
    return %arg0, %c0_i32 : i32, i32
  }
  func.func @transform_5(%arg0: i32) -> (i32, i32) {
    %c0_i32 = arith.constant 0 : i32
    %c0_i32_0 = arith.constant 0 : i32
    return %arg0, %c0_i32 : i32, i32
  }
}

module attributes {stable_mosaic.version = 11 : i64} {
  func.func @_los_kernel(%arg0: i32, %arg1: memref<64x128xf32, #tpu.memory_space<vmem>>, %arg2: memref<64x128xf32, #tpu.memory_space<vmem>>, %arg3: memref<64x1xf32, #tpu.memory_space<vmem>>, %arg4: memref<64x1xf32, #tpu.memory_space<vmem>>, %arg5: memref<8x128xf32, #tpu.memory_space<vmem>>, %arg6: memref<8x128xf32, #tpu.memory_space<vmem>>) attributes {dimension_semantics = [#tpu.dimension_semantics<parallel>], iteration_bounds = array<i64: 2>, scalar_prefetch = 0 : i64, scratch_operands = 0 : i64, tpu.core_type = #tpu.core_type<tc>, window_params = [{transform_indices = @transform_0, window_bounds = array<i64: 64, 128>}, {transform_indices = @transform_1, window_bounds = array<i64: 64, 128>}, {transform_indices = @transform_2, window_bounds = array<i64: 64, 1>}, {transform_indices = @transform_3, window_bounds = array<i64: 64, 1>}, {transform_indices = @transform_4, window_bounds = array<i64: 8, 128>}, {transform_indices = @transform_5, window_bounds = array<i64: 8, 128>}]} {
    %c0 = arith.constant 0 : index
    %c0_0 = arith.constant 0 : index
    %0 = vector.load %arg1[%c0, %c0_0] : memref<64x128xf32, #tpu.memory_space<vmem>>, vector<64x128xf32>
    %c0_1 = arith.constant 0 : index
    %c0_2 = arith.constant 0 : index
    %1 = vector.load %arg2[%c0_1, %c0_2] : memref<64x128xf32, #tpu.memory_space<vmem>>, vector<64x128xf32>
    %c0_3 = arith.constant 0 : index
    %c0_4 = arith.constant 0 : index
    %2 = vector.load %arg3[%c0_3, %c0_4] : memref<64x1xf32, #tpu.memory_space<vmem>>, vector<64x1xf32>
    %c0_5 = arith.constant 0 : index
    %c0_6 = arith.constant 0 : index
    %3 = vector.load %arg4[%c0_5, %c0_6] : memref<64x1xf32, #tpu.memory_space<vmem>>, vector<64x1xf32>
    %4 = vector.broadcast %2 : vector<64x1xf32> to vector<64x128xf32>
    %5 = arith.subf %0, %4 : vector<64x128xf32>
    %cst = arith.constant 3.000000e+00 : f32
    %6 = vector.broadcast %cst : f32 to vector<64x128xf32>
    %7 = arith.mulf %5, %6 : vector<64x128xf32>
    %cst_7 = arith.constant -5.000000e-01 : f32
    %8 = vector.broadcast %cst_7 : f32 to vector<64x128xf32>
    %9 = arith.mulf %8, %7 : vector<64x128xf32>
    %10 = arith.mulf %9, %7 : vector<64x128xf32>
    %11 = math.exp %10 : vector<64x128xf32>
    %cst_8 = arith.constant 1.19682682 : f32
    %12 = vector.broadcast %cst_8 : f32 to vector<64x128xf32>
    %13 = arith.mulf %12, %11 : vector<64x128xf32>
    %14 = vector.shape_cast %3 : vector<64x1xf32> to vector<64x1xf32>
    %15 = vector.broadcast %14 : vector<64x1xf32> to vector<64x128xf32>
    %16 = math.absf %5 : vector<64x128xf32>
    %cst_9 = arith.constant 1.000000e+00 : f32
    %17 = vector.broadcast %cst_9 : f32 to vector<64x128xf32>
    %18 = arith.cmpf ole, %16, %17 : vector<64x128xf32>
    %19 = arith.subf %1, %13 : vector<64x128xf32>
    %20 = arith.mulf %19, %19 : vector<64x128xf32>
    %cst_10 = arith.constant 0.000000e+00 : f32
    %21 = vector.broadcast %cst_10 : f32 to vector<64x128xf32>
    %22 = arith.select %18, %20, %21 : vector<64x128xi1>, vector<64x128xf32>
    %23 = arith.mulf %22, %15 : vector<64x128xf32>
    %cst_11 = arith.constant -1.000000e+00 : f32
    %24 = vector.broadcast %cst_11 : f32 to vector<64x128xf32>
    %25 = arith.cmpf olt, %5, %24 : vector<64x128xf32>
    %26 = arith.mulf %1, %1 : vector<64x128xf32>
    %cst_12 = arith.constant 0.000000e+00 : f32
    %27 = vector.broadcast %cst_12 : f32 to vector<64x128xf32>
    %28 = arith.select %25, %26, %27 : vector<64x128xi1>, vector<64x128xf32>
    %29 = arith.mulf %28, %15 : vector<64x128xf32>
    %30 = tpu.iota {dimensions = array<i32: 0>} : vector<64x128xi32>
    %c64_i32 = arith.constant 64 : i32
    %31 = arith.muli %arg0, %c64_i32 : i32
    %32 = vector.broadcast %31 : i32 to vector<64x128xi32>
    %33 = arith.addi %30, %32 : vector<64x128xi32>
    %c100_i32 = arith.constant 100 : i32
    %34 = vector.broadcast %c100_i32 : i32 to vector<64x128xi32>
    %35 = arith.cmpi slt, %33, %34 : vector<64x128xi32>
    %cst_13 = arith.constant 0.000000e+00 : f32
    %36 = vector.broadcast %cst_13 : f32 to vector<64x128xf32>
    %37 = arith.select %35, %23, %36 : vector<64x128xi1>, vector<64x128xf32>
    %cst_14 = arith.constant 0.000000e+00 : f32
    %38 = vector.broadcast %cst_14 : f32 to vector<64x128xf32>
    %39 = arith.select %35, %29, %38 : vector<64x128xi1>, vector<64x128xf32>
    %cst_15 = arith.constant dense<0.000000e+00> : vector<128xf32>
    %40 = vector.multi_reduction <add>, %37, %cst_15 [0] : vector<64x128xf32> to vector<128xf32>
    %41 = vector.shape_cast %40 : vector<128xf32> to vector<1x128xf32>
    %42 = vector.shape_cast %41 : vector<1x128xf32> to vector<1x128xf32>
    %43 = vector.broadcast %42 : vector<1x128xf32> to vector<8x128xf32>
    %c0_16 = arith.constant 0 : index
    %c0_17 = arith.constant 0 : index
    %44 = vector.load %arg5[%c0_16, %c0_17] : memref<8x128xf32, #tpu.memory_space<vmem>>, vector<8x128xf32>
    tpu.vector_store %arg5[%c0_16, %c0_17], %43 {strides = array<i32>} : memref<8x128xf32, #tpu.memory_space<vmem>>, vector<8x128xf32>,
    %cst_18 = arith.constant dense<0.000000e+00> : vector<128xf32>
    %45 = vector.multi_reduction <add>, %39, %cst_18 [0] : vector<64x128xf32> to vector<128xf32>
    %46 = vector.shape_cast %45 : vector<128xf32> to vector<1x128xf32>
    %47 = vector.shape_cast %46 : vector<1x128xf32> to vector<1x128xf32>
    %48 = vector.broadcast %47 : vector<1x128xf32> to vector<8x128xf32>
    %c0_19 = arith.constant 0 : index
    %c0_20 = arith.constant 0 : index
    %49 = vector.load %arg6[%c0_19, %c0_20] : memref<8x128xf32, #tpu.memory_space<vmem>>, vector<8x128xf32>
    tpu.vector_store %arg6[%c0_19, %c0_20], %48 {strides = array<i32>} : memref<8x128xf32, #tpu.memory_space<vmem>>, vector<8x128xf32>,
    return
  }
  func.func @transform_0(%arg0: i32) -> (i32, i32) {
    %c0_i32 = arith.constant 0 : i32
    %c0_i32_0 = arith.constant 0 : i32
    return %arg0, %c0_i32 : i32, i32
  }
  func.func @transform_1(%arg0: i32) -> (i32, i32) {
    %c0_i32 = arith.constant 0 : i32
    %c0_i32_0 = arith.constant 0 : i32
    return %arg0, %c0_i32 : i32, i32
  }
  func.func @transform_2(%arg0: i32) -> (i32, i32) {
    %c0_i32 = arith.constant 0 : i32
    %c0_i32_0 = arith.constant 0 : i32
    return %arg0, %c0_i32 : i32, i32
  }
  func.func @transform_3(%arg0: i32) -> (i32, i32) {
    %c0_i32 = arith.constant 0 : i32
    %c0_i32_0 = arith.constant 0 : i32
    return %arg0, %c0_i32 : i32, i32
  }
  func.func @transform_4(%arg0: i32) -> (i32, i32) {
    %c0_i32 = arith.constant 0 : i32
    %c0_i32_0 = arith.constant 0 : i32
    return %arg0, %c0_i32 : i32, i32
  }
  func.func @transform_5(%arg0: i32) -> (i32, i32) {
    %c0_i32 = arith.constant 0 : i32
    %c0_i32_0 = arith.constant 0 : i32
    return %arg0, %c0_i32 : i32, i32
  }
}

</mosaic_0001>

<llo_original>
// kernel: lidar_loss.4
$region0: #{lidar_loss.4}
  #allocation0 [shape = 'u32[]', space=smem, size = 0x4, offset = 0x4, fixed_abs, tag = 'smem constant byte address 0x4 - core index']
  #allocation1 [shape = 'u32[144,128]{1,0:T(1,128)}', space=vmem, size = 0x12000, scoped, tag = 'internal scratch']
  #allocation2 [shape = 'f32[1]{0:T(128)S(6)}', space=smem, size = 0x200, scoped, tag = 'scoped memory for lidar_loss.4']
  %s0 = inlined_call_operand.<no memory space> [shape: f32[1], index: 0, kind: input, shape index: {}]
  %s1 = inlined_call_operand.vmem [shape: f32[72,128], index: 1, kind: input, shape index: {}]
  %s2 = inlined_call_operand.vmem [shape: f32[72,128], index: 2, kind: input, shape index: {}]
  %s3 = inlined_call_operand.vmem [shape: f32[72,128], index: 3, kind: input, shape index: {}]
  %s4 = inlined_call_operand.vmem [shape: f32[16,128], index: 4, kind: output, shape index: {0}]
  %s5 = inlined_call_operand.vmem [shape: f32[16,128], index: 5, kind: output, shape index: {1}]
  %6 = xla_tuple %s4, %s5
  %s7 = sld [smem:[#allocation0]]
  $region57: #{lidar_loss.4} parent=0
    _
  %s9 = ssub.s32 1, %s7
  %s10 = scalar_select 0, %s9, %s7
  %11 = sst [smem:[#allocation2]] %s0
  loop: start=0, step=1, limit=4
  $region2: #{lidar_loss.4} parent=0 // loop_pre_header
    _
  $region3: #{lidar_loss.4} parent=0 // loop_header
    %s13 = sphi 0, %s17
    %p14 = scmp.ge.s32.totalorder %s13, 4
    %s21 = sphi 0, %s21
    %s23 = sphi 0, %s21
    %s24 = sphi 0, %s23
    %s38 = sphi 0, %s24
    %s44 = sphi 0, %s46
    %s47 = sphi 0, %s44
    %s48 = sphi 0, %s47
    %s64 = sphi 0, %s48
    %s70 = sphi 0, %s72
    %s73 = sphi 0, %s70
    %s74 = sphi 0, %s73
    %s90 = sphi 0, %s74
    %s96 = sphi 0, %s98
    %s99 = sphi 0, %s96
    %s100 = sphi 0, %s99
    %s116 = sphi 0, %s100
    %s122 = sphi 0, %s124
    %s125 = sphi 0, %s122
    %s126 = sphi 0, %s125
    %s142 = sphi 0, %s126
    %s148 = sphi 0, %s150
    %s151 = sphi 0, %s148
    %s152 = sphi 0, %s151
    %s168 = sphi 0, %s152
  $region4: #{lidar_loss.4} parent=0 // loop_header_branch
    %16 = sbr.rel (%p14) target = $region8
  $region5: #{lidar_loss.4} parent=0 // loop_body
    %s18 = ssub.s32 %s13, 1
    %s19 = ssub.s32 %s13, 2
    %s20 = sadd.s32 %s13, 1
    %s22 = sadd.s32 %s21, 1
    %p25 = scmp.eq.s32.totalorder %s13, 1
    %p26 = scmp.ne.s32.totalorder %s21, %s23
    %p27 = scmp.eq.s32.totalorder %s13, 0
    %p28 = por %p26, %p27
    %p29 = scmp.ne.s32.totalorder %s21, %s23
    %p30 = scmp.eq.s32.totalorder %s18, 1
    %p31 = por %p29, %p30
    %p32 = scmp.ne.s32.totalorder %s23, %s24
    %p33 = scmp.eq.s32.totalorder %s18, 0
    %p34 = por %p32, %p33
    %p35 = scmp.ne.s32.totalorder %s23, %s24
    %p36 = scmp.eq.s32.totalorder %s19, 1
    %p37 = por %p35, %p36
    %p39 = scmp.ne.s32.totalorder %s24, %s38
    %p40 = scmp.eq.s32.totalorder %s19, 0
    %p41 = por %p39, %p40
    %s42 = ssub.s32 %s13, %s20
    %p43 = scmp.eq.s32.totalorder %s42, 0
    %s45 = sadd.s32 %s44, 1
    %s46 = scalar_select %p43, %s44, %s45
    %p49 = pneg %p43
    %p50 = scmp.eq.s32.totalorder %s13, 1
    %p51 = por %p49, %p50
    %p52 = scmp.ne.s32.totalorder %s44, %s47
    %p53 = scmp.eq.s32.totalorder %s13, 0
    %p54 = por %p52, %p53
    %p55 = scmp.ne.s32.totalorder %s44, %s47
    %p56 = scmp.eq.s32.totalorder %s18, 1
    %p57 = por %p55, %p56
    %p58 = scmp.ne.s32.totalorder %s47, %s48
    %p59 = scmp.eq.s32.totalorder %s18, 0
    %p60 = por %p58, %p59
    %p61 = scmp.ne.s32.totalorder %s47, %s48
    %p62 = scmp.eq.s32.totalorder %s19, 1
    %p63 = por %p61, %p62
    %p65 = scmp.ne.s32.totalorder %s48, %s64
    %p66 = scmp.eq.s32.totalorder %s19, 0
    %p67 = por %p65, %p66
    %s68 = ssub.s32 %s13, %s20
    %p69 = scmp.eq.s32.totalorder %s68, 0
    %s71 = sadd.s32 %s70, 1
    %s72 = scalar_select %p69, %s70, %s71
    %p75 = pneg %p69
    %p76 = scmp.eq.s32.totalorder %s13, 1
    %p77 = por %p75, %p76
    %p78 = scmp.ne.s32.totalorder %s70, %s73
    %p79 = scmp.eq.s32.totalorder %s13, 0
    %p80 = por %p78, %p79
    %p81 = scmp.ne.s32.totalorder %s70, %s73
    %p82 = scmp.eq.s32.totalorder %s18, 1
    %p83 = por %p81, %p82
    %p84 = scmp.ne.s32.totalorder %s73, %s74
    %p85 = scmp.eq.s32.totalorder %s18, 0
    %p86 = por %p84, %p85
    %p87 = scmp.ne.s32.totalorder %s73, %s74
    %p88 = scmp.eq.s32.totalorder %s19, 1
    %p89 = por %p87, %p88
    %p91 = scmp.ne.s32.totalorder %s74, %s90
    %p92 = scmp.eq.s32.totalorder %s19, 0
    %p93 = por %p91, %p92
    %s94 = ssub.s32 %s13, %s20
    %p95 = scmp.eq.s32.totalorder %s94, 0
    %s97 = sadd.s32 %s96, 1
    %s98 = scalar_select %p95, %s96, %s97
    %p101 = pneg %p95
    %p102 = scmp.eq.s32.totalorder %s13, 1
    %p103 = por %p101, %p102
    %p104 = scmp.ne.s32.totalorder %s96, %s99
    %p105 = scmp.eq.s32.totalorder %s13, 0
    %p106 = por %p104, %p105
    %p107 = scmp.ne.s32.totalorder %s96, %s99
    %p108 = scmp.eq.s32.totalorder %s18, 1
    %p109 = por %p107, %p108
    %p110 = scmp.ne.s32.totalorder %s99, %s100
    %p111 = scmp.eq.s32.totalorder %s18, 0
    %p112 = por %p110, %p111
    %p113 = scmp.ne.s32.totalorder %s99, %s100
    %p114 = scmp.eq.s32.totalorder %s19, 1
    %p115 = por %p113, %p114
    %p117 = scmp.ne.s32.totalorder %s100, %s116
    %p118 = scmp.eq.s32.totalorder %s19, 0
    %p119 = por %p117, %p118
    %s120 = ssub.s32 %s13, %s20
    %p121 = scmp.eq.s32.totalorder %s120, 0
    %s123 = sadd.s32 %s122, 1
    %s124 = scalar_select %p121, %s122, %s123
    %p127 = pneg %p121
    %p128 = scmp.eq.s32.totalorder %s13, 1
    %p129 = por %p127, %p128
    %p130 = scmp.ne.s32.totalorder %s122, %s125
    %p131 = scmp.eq.s32.totalorder %s13, 0
    %p132 = por %p130, %p131
    %p133 = scmp.ne.s32.totalorder %s122, %s125
    %p134 = scmp.eq.s32.totalorder %s18, 1
    %p135 = por %p133, %p134
    %p136 = scmp.ne.s32.totalorder %s125, %s126
    %p137 = scmp.eq.s32.totalorder %s18, 0
    %p138 = por %p136, %p137
    %p139 = scmp.ne.s32.totalorder %s125, %s126
    %p140 = scmp.eq.s32.totalorder %s19, 1
    %p141 = por %p139, %p140
    %p143 = scmp.ne.s32.totalorder %s126, %s142
    %p144 = scmp.eq.s32.totalorder %s19, 0
    %p145 = por %p143, %p144
    %s146 = ssub.s32 %s13, %s20
    %p147 = scmp.eq.s32.totalorder %s146, 0
    %s149 = sadd.s32 %s148, 1
    %s150 = scalar_select %p147, %s148, %s149
    %p153 = pneg %p147
    %p154 = scmp.eq.s32.totalorder %s13, 1
    %p155 = por %p153, %p154
    %p156 = scmp.ne.s32.totalorder %s148, %s151
    %p157 = scmp.eq.s32.totalorder %s13, 0
    %p158 = por %p156, %p157
    %p159 = scmp.ne.s32.totalorder %s148, %s151
    %p160 = scmp.eq.s32.totalorder %s18, 1
    %p161 = por %p159, %p160
    %p162 = scmp.ne.s32.totalorder %s151, %s152
    %p163 = scmp.eq.s32.totalorder %s18, 0
    %p164 = por %p162, %p163
    %p165 = scmp.ne.s32.totalorder %s151, %s152
    %p166 = scmp.eq.s32.totalorder %s19, 1
    %p167 = por %p165, %p166
    %p169 = scmp.ne.s32.totalorder %s152, %s168
    %p170 = scmp.eq.s32.totalorder %s19, 0
    %p171 = por %p169, %p170
    %p172 = scmp.le.s32.totalorder 1, %s13
    %p173 = scmp.lt.s32.totalorder %s13, 3
    %p174 = pnand %p172, %p173
    %p175 = pneg %p174
    // Predicated region
    $region9: #{lidar_loss.4} parent=5 // pred_check
      _
    $region10: #{lidar_loss.4} parent=5 // pred_check_branch
      %177 = sbr.rel (%p174) target = $region12
    $region11: #{lidar_loss.4} parent=5 // pred_region
      %s178 = ssub.s32 %s13, 1
      // Predicated region
      $region13: #{lidar_loss.4} parent=11 // pred_check
        %p179 = pneg %p34
      $region14: #{lidar_loss.4} parent=11 // pred_check_branch
        %181 = sbr.rel (%p179) target = $region16
      $region15: #{lidar_loss.4} parent=11 // pred_region
        _
      $region16: #{lidar_loss.4} parent=11 // pred_fallthru
        _
    $region12: #{lidar_loss.4} parent=5 // pred_fallthru
      _
    %p182 = scmp.lt.s32.totalorder %s13, 2
    // Predicated region
    $region17: #{lidar_loss.4} parent=5 // pred_check
      %p183 = pneg %p182
    $region18: #{lidar_loss.4} parent=5 // pred_check_branch
      %185 = sbr.rel (%p183) target = $region20
    $region19: #{lidar_loss.4} parent=5 // pred_region
      // Predicated region
      $region21: #{lidar_loss.4} parent=19 // pred_check
        %p186 = pneg %p54
      $region22: #{lidar_loss.4} parent=19 // pred_check_branch
        %188 = sbr.rel (%p186) target = $region24
      $region23: #{lidar_loss.4} parent=19 // pred_region
        %s189 = smul.u32 8, %s13
        %s190 = ssub.s32 9, %s189
        %p191 = scmp.lt.s32.totalorder %s190, 8
        %s192 = scalar_select %p191, %s190, 8
        %s193 = smul.u32 128, %s192
        %p194 = scmp.lt.s32.totalorder %s189, 8
        %s195 = scalar_select %p194, %s189, 8
        %s196 = smul.addr %s195, 8
        %s197 = scalar_lea.vmem %s1, %s196
        %s198 = smul.u32 8, %s13
        %s199 = ssub.s32 9, %s198
        %p200 = scmp.lt.s32.totalorder %s199, 8
        %s201 = scalar_select %p200, %s199, 8
        %s202 = smul.u32 128, %s201
      $region24: #{lidar_loss.4} parent=19 // pred_fallthru
        _
      // Predicated region
      $region25: #{lidar_loss.4} parent=19 // pred_check
        %p203 = pneg %p80
      $region26: #{lidar_loss.4} parent=19 // pred_check_branch
        %205 = sbr.rel (%p203) target = $region28
      $region27: #{lidar_loss.4} parent=19 // pred_region
        %s206 = smul.u32 8, %s13
        %s207 = ssub.s32 9, %s206
        %p208 = scmp.lt.s32.totalorder %s207, 8
        %s209 = scalar_select %p208, %s207, 8
        %s210 = smul.u32 128, %s209
        %p211 = scmp.lt.s32.totalorder %s206, 8
        %s212 = scalar_select %p211, %s206, 8
        %s213 = smul.addr %s212, 8
        %s214 = scalar_lea.vmem %s2, %s213
        %s215 = smul.u32 8, %s13
        %s216 = ssub.s32 9, %s215
        %p217 = scmp.lt.s32.totalorder %s216, 8
        %s218 = scalar_select %p217, %s216, 8
        %s219 = smul.u32 128, %s218
      $region28: #{lidar_loss.4} parent=19 // pred_fallthru
        _
      // Predicated region
      $region29: #{lidar_loss.4} parent=19 // pred_check
        %p220 = pneg %p106
      $region30: #{lidar_loss.4} parent=19 // pred_check_branch
        %222 = sbr.rel (%p220) target = $region32
      $region31: #{lidar_loss.4} parent=19 // pred_region
        %s223 = smul.u32 8, %s13
        %s224 = ssub.s32 9, %s223
        %p225 = scmp.lt.s32.totalorder %s224, 8
        %s226 = scalar_select %p225, %s224, 8
        %s227 = smul.u32 128, %s226
        %p228 = scmp.lt.s32.totalorder %s223, 8
        %s229 = scalar_select %p228, %s223, 8
        %s230 = smul.addr %s229, 8
        %s231 = scalar_lea.vmem %s3, %s230
        %s232 = smul.u32 8, %s13
        %s233 = ssub.s32 9, %s232
        %p234 = scmp.lt.s32.totalorder %s233, 8
        %s235 = scalar_select %p234, %s233, 8
        %s236 = smul.u32 128, %s235
      $region32: #{lidar_loss.4} parent=19 // pred_fallthru
        _
    $region20: #{lidar_loss.4} parent=5 // pred_fallthru
      _
    %p237 = scmp.le.s32.totalorder 1, %s13
    %p238 = scmp.lt.s32.totalorder %s13, 3
    %p239 = pnand %p237, %p238
    %p240 = pneg %p239
    // Predicated region
    $region33: #{lidar_loss.4} parent=5 // pred_check
      _
    $region34: #{lidar_loss.4} parent=5 // pred_check_branch
      %242 = sbr.rel (%p239) target = $region36
    $region35: #{lidar_loss.4} parent=5 // pred_region
      %s243 = ssub.s32 %s13, 1
      %p244 = pneg %p34
      %p245 = pneg %p31
      %s246 = smul.u32 8, %s18
      %s247 = ssub.s32 9, %s246
      %p248 = scmp.lt.s32.totalorder %s247, 8
      %s249 = scalar_select %p248, %s247, 8
      %s250 = smul.u32 128, %s249
      %p251 = scmp.lt.s32.totalorder %s246, 8
      %s252 = scalar_select %p251, %s246, 8
      %s253 = smul.addr %s252, 8
      %s254 = scalar_lea.vmem %s1, %s253
      %p255 = pneg %p60
      %p256 = pneg %p57
      %s257 = smul.u32 8, %s18
      %s258 = ssub.s32 9, %s257
      %p259 = scmp.lt.s32.totalorder %s258, 8
      %s260 = scalar_select %p259, %s258, 8
      %s261 = smul.u32 128, %s260
      %p262 = scmp.lt.s32.totalorder %s257, 8
      %s263 = scalar_select %p262, %s257, 8
      %s264 = smul.addr %s263, 8
      %s265 = scalar_lea.vmem %s2, %s264
      %p266 = pneg %p86
      %p267 = pneg %p83
      %s268 = smul.u32 8, %s18
      %s269 = ssub.s32 9, %s268
      %p270 = scmp.lt.s32.totalorder %s269, 8
      %s271 = scalar_select %p270, %s269, 8
      %s272 = smul.u32 128, %s271
      %p273 = scmp.lt.s32.totalorder %s268, 8
      %s274 = scalar_select %p273, %s268, 8
      %s275 = smul.addr %s274, 8
      %s276 = scalar_lea.vmem %s3, %s275
      %p277 = pneg %p112
      %p278 = pneg %p109
      %p279 = pneg %p138
      %p280 = pneg %p135
      %p281 = scmp.lt.s32.totalorder %s18, 1
      %s282 = scalar_select %p281, %s18, 1
      %s283 = smul.addr %s282, 8
      %s284 = scalar_lea.vmem %s4, %s283
      %p285 = pneg %p164
      %p286 = pneg %p161
      %p287 = scmp.lt.s32.totalorder %s18, 1
      %s288 = scalar_select %p287, %s18, 1
      %s289 = smul.addr %s288, 8
      %s290 = scalar_lea.vmem %s5, %s289
      %s291 = smul.u32 8, %s18
      %s292 = ssub.s32 9, %s291
      %p293 = scmp.lt.s32.totalorder %s292, 8
      %s294 = scalar_select %p293, %s292, 8
      %s295 = smul.u32 128, %s294
      %p296 = scmp.lt.s32.totalorder %s291, 8
      %s297 = scalar_select %p296, %s291, 8
      %s298 = smul.addr %s297, 8
      %s299 = scalar_lea.vmem %s1, %s298
      %s300 = smul.u32 8, %s18
      %s301 = ssub.s32 9, %s300
      %p302 = scmp.lt.s32.totalorder %s301, 8
      %s303 = scalar_select %p302, %s301, 8
      %s304 = smul.u32 128, %s303
      %s305 = smul.u32 8, %s18
      %s306 = ssub.s32 9, %s305
      %p307 = scmp.lt.s32.totalorder %s306, 8
      %s308 = scalar_select %p307, %s306, 8
      %s309 = smul.u32 128, %s308
      %p310 = scmp.lt.s32.totalorder %s305, 8
      %s311 = scalar_select %p310, %s305, 8
      %s312 = smul.addr %s311, 8
      %s313 = scalar_lea.vmem %s2, %s312
      %s314 = smul.u32 8, %s18
      %s315 = ssub.s32 9, %s314
      %p316 = scmp.lt.s32.totalorder %s315, 8
      %s317 = scalar_select %p316, %s315, 8
      %s318 = smul.u32 128, %s317
      %s319 = smul.u32 8, %s18
      %s320 = ssub.s32 9, %s319
      %p321 = scmp.lt.s32.totalorder %s320, 8
      %s322 = scalar_select %p321, %s320, 8
      %s323 = smul.u32 128, %s322
      %p324 = scmp.lt.s32.totalorder %s319, 8
      %s325 = scalar_select %p324, %s319, 8
      %s326 = smul.addr %s325, 8
      %s327 = scalar_lea.vmem %s3, %s326
      %s328 = smul.u32 8, %s18
      %s329 = ssub.s32 9, %s328
      %p330 = scmp.lt.s32.totalorder %s329, 8
      %s331 = scalar_select %p330, %s329, 8
      %s332 = smul.u32 128, %s331
      %p333 = scmp.lt.s32.totalorder %s18, 1
      %s334 = scalar_select %p333, %s18, 1
      %s335 = smul.addr %s334, 8
      %s336 = scalar_lea.vmem %s4, %s335
      %p337 = scmp.lt.s32.totalorder %s18, 1
      %s338 = scalar_select %p337, %s18, 1
      %s339 = smul.addr %s338, 8
      %s340 = scalar_lea.vmem %s5, %s339
      %s341 = sld [smem:[#allocation2]]
      %v342 = vld [vmem:[%s299] sm:$0xff]
      %v343 = vld [vmem:[%s299 + $0x8] sm:$0xff]
      %v344 = vld [vmem:[%s299 + $0x10] sm:$0xff]
      %v345 = vld [vmem:[%s299 + $0x18] sm:$0xff]
      %v346 = vld [vmem:[%s299 + $0x20] sm:$0xff]
      %v347 = vld [vmem:[%s299 + $0x28] sm:$0xff]
      %v348 = vld [vmem:[%s299 + $0x30] sm:$0xff]
      %v349 = vld [vmem:[%s299 + $0x38] sm:$0xff]
      %v350 = vld [vmem:[%s313] sm:$0xff]
      %v351 = vld [vmem:[%s313 + $0x8] sm:$0xff]
      %v352 = vld [vmem:[%s313 + $0x10] sm:$0xff]
      %v353 = vld [vmem:[%s313 + $0x18] sm:$0xff]
      %v354 = vld [vmem:[%s313 + $0x20] sm:$0xff]
      %v355 = vld [vmem:[%s313 + $0x28] sm:$0xff]
      %v356 = vld [vmem:[%s313 + $0x30] sm:$0xff]
      %v357 = vld [vmem:[%s313 + $0x38] sm:$0xff]
      %v358 = vld [vmem:[%s327] sm:$0xff]
      %v359 = vld [vmem:[%s327 + $0x8] sm:$0xff]
      %v360 = vld [vmem:[%s327 + $0x10] sm:$0xff]
      %v361 = vld [vmem:[%s327 + $0x18] sm:$0xff]
      %v362 = vld [vmem:[%s327 + $0x20] sm:$0xff]
      %v363 = vld [vmem:[%s327 + $0x28] sm:$0xff]
      %v364 = vld [vmem:[%s327 + $0x30] sm:$0xff]
      %v365 = vld [vmem:[%s327 + $0x38] sm:$0xff]
      %vm366 = vcmp.gt.f32.partialorder %v358, 1e-07
      %vm367 = vcmp.gt.f32.partialorder %v359, 1e-07
      %vm368 = vcmp.gt.f32.partialorder %v360, 1e-07
      %vm369 = vcmp.gt.f32.partialorder %v361, 1e-07
      %vm370 = vcmp.gt.f32.partialorder %v362, 1e-07
      %vm371 = vcmp.gt.f32.partialorder %v363, 1e-07
      %vm372 = vcmp.gt.f32.partialorder %v364, 1e-07
      %vm373 = vcmp.gt.f32.partialorder %v365, 1e-07
      %vm374 = vcmp.gt.f32.partialorder %v350, 0.0
      %vm375 = vcmp.gt.f32.partialorder %v351, 0.0
      %vm376 = vcmp.gt.f32.partialorder %v352, 0.0
      %vm377 = vcmp.gt.f32.partialorder %v353, 0.0
      %vm378 = vcmp.gt.f32.partialorder %v354, 0.0
      %vm379 = vcmp.gt.f32.partialorder %v355, 0.0
      %vm380 = vcmp.gt.f32.partialorder %v356, 0.0
      %vm381 = vcmp.gt.f32.partialorder %v357, 0.0
      %vm382 = vmand %vm366, %vm374
      %vm383 = vmand %vm367, %vm375
      %vm384 = vmand %vm368, %vm376
      %vm385 = vmand %vm369, %vm377
      %vm386 = vmand %vm370, %vm378
      %vm387 = vmand %vm371, %vm379
      %vm388 = vmand %vm372, %vm380
      %vm389 = vmand %vm373, %vm381
      %v390 = vsel %vm382, 1, 0
      %v391 = vsel %vm383, 1, 0
      %v392 = vsel %vm384, 1, 0
      %v393 = vsel %vm385, 1, 0
      %v394 = vsel %vm386, 1, 0
      %v395 = vsel %vm387, 1, 0
      %v396 = vsel %vm388, 1, 0
      %v397 = vsel %vm389, 1, 0
      %v398 = vcvt.s32.f32 %v390
      %v399 = vcvt.s32.f32 %v391
      %v400 = vcvt.s32.f32 %v392
      %v401 = vcvt.s32.f32 %v393
      %v402 = vcvt.s32.f32 %v394
      %v403 = vcvt.s32.f32 %v395
      %v404 = vcvt.s32.f32 %v396
      %v405 = vcvt.s32.f32 %v397
      %v406 = vsub.f32 %v342, %v350
      %v407 = vsub.f32 %v343, %v351
      %v408 = vsub.f32 %v344, %v352
      %v409 = vsub.f32 %v345, %v353
      %v410 = vsub.f32 %v346, %v354
      %v411 = vsub.f32 %v347, %v355
      %v412 = vsub.f32 %v348, %v356
      %v413 = vsub.f32 %v349, %v357
      %v414 = vand.u32 2147483647, %v406
      %v415 = vand.u32 2147483647, %v407
      %v416 = vand.u32 2147483647, %v408
      %v417 = vand.u32 2147483647, %v409
      %v418 = vand.u32 2147483647, %v410
      %v419 = vand.u32 2147483647, %v411
      %v420 = vand.u32 2147483647, %v412
      %v421 = vand.u32 2147483647, %v413
      %v422 = vmul.f32 %v414, %v398
      %v423 = vmul.f32 %v415, %v399
      %v424 = vmul.f32 %v416, %v400
      %v425 = vmul.f32 %v417, %v401
      %v426 = vmul.f32 %v418, %v402
      %v427 = vmul.f32 %v419, %v403
      %v428 = vmul.f32 %v420, %v404
      %v429 = vmul.f32 %v421, %v405
      %s430 = smul.f32 %s341, 100.0
      %v431 = vstv %s430
      %vm432 = vcmp.le.f32.partialorder %v422, %v431
      %vm433 = vcmp.le.f32.partialorder %v423, %v431
      %vm434 = vcmp.le.f32.partialorder %v424, %v431
      %vm435 = vcmp.le.f32.partialorder %v425, %v431
      %vm436 = vcmp.le.f32.partialorder %v426, %v431
      %vm437 = vcmp.le.f32.partialorder %v427, %v431
      %vm438 = vcmp.le.f32.partialorder %v428, %v431
      %vm439 = vcmp.le.f32.partialorder %v429, %v431
      %v440 = vsel %vm432, 1, 0
      %v441 = vsel %vm433, 1, 0
      %v442 = vsel %vm434, 1, 0
      %v443 = vsel %vm435, 1, 0
      %v444 = vsel %vm436, 1, 0
      %v445 = vsel %vm437, 1, 0
      %v446 = vsel %vm438, 1, 0
      %v447 = vsel %vm439, 1, 0
      %v448 = vcvt.s32.f32 %v440
      %v449 = vcvt.s32.f32 %v441
      %v450 = vcvt.s32.f32 %v442
      %v451 = vcvt.s32.f32 %v443
      %v452 = vcvt.s32.f32 %v444
      %v453 = vcvt.s32.f32 %v445
      %v454 = vcvt.s32.f32 %v446
      %v455 = vcvt.s32.f32 %v447
      %v456 = vmul.f32 %v398, %v448
      %v457 = vmul.f32 %v399, %v449
      %v458 = vmul.f32 %v400, %v450
      %v459 = vmul.f32 %v401, %v451
      %v460 = vmul.f32 %v402, %v452
      %v461 = vmul.f32 %v403, %v453
      %v462 = vmul.f32 %v404, %v454
      %v463 = vmul.f32 %v405, %v455
      %v464 = vadd.f32 %v342, 1.0
      %v465 = vadd.f32 %v343, 1.0
      %v466 = vadd.f32 %v344, 1.0
      %v467 = vadd.f32 %v345, 1.0
      %v468 = vadd.f32 %v346, 1.0
      %v469 = vadd.f32 %v347, 1.0
      %v470 = vadd.f32 %v348, 1.0
      %v471 = vadd.f32 %v349, 1.0
      %v472 = vadd.f32 %v350, 1.0
      %v473 = vadd.f32 %v351, 1.0
      %v474 = vadd.f32 %v352, 1.0
      %v475 = vadd.f32 %v353, 1.0
      %v476 = vadd.f32 %v354, 1.0
      %v477 = vadd.f32 %v355, 1.0
      %v478 = vadd.f32 %v356, 1.0
      %v479 = vadd.f32 %v357, 1.0
      %v480 = vrcp.pop %v472
      %v481 = vmul.f32 %v464, %v480
      %v482 = vrcp.pop %v473
      %v483 = vmul.f32 %v465, %v482
      %v484 = vrcp.pop %v474
      %v485 = vmul.f32 %v466, %v484
      %v486 = vrcp.pop %v475
      %v487 = vmul.f32 %v467, %v486
      %v488 = vrcp.pop %v476
      %v489 = vmul.f32 %v468, %v488
      %v490 = vrcp.pop %v477
      %v491 = vmul.f32 %v469, %v490
      %v492 = vrcp.pop %v478
      %v493 = vmul.f32 %v470, %v492
      %v494 = vrcp.pop %v479
      %v495 = vmul.f32 %v471, %v494
      %v496 = vlog2.pop %v481
      %v497 = vmul.f32 %v496, 0.6931472
      %v498 = vlog2.pop %v483
      %v499 = vmul.f32 %v498, 0.6931472
      %v500 = vlog2.pop %v485
      %v501 = vmul.f32 %v500, 0.6931472
      %v502 = vlog2.pop %v487
      %v503 = vmul.f32 %v502, 0.6931472
      %v504 = vlog2.pop %v489
      %v505 = vmul.f32 %v504, 0.6931472
      %v506 = vlog2.pop %v491
      %v507 = vmul.f32 %v506, 0.6931472
      %v508 = vlog2.pop %v493
      %v509 = vmul.f32 %v508, 0.6931472
      %v510 = vlog2.pop %v495
      %v511 = vmul.f32 %v510, 0.6931472
      %v512 = vand.u32 2147483647, %v497
      %v513 = vand.u32 2147483647, %v499
      %v514 = vand.u32 2147483647, %v501
      %v515 = vand.u32 2147483647, %v503
      %v516 = vand.u32 2147483647, %v505
      %v517 = vand.u32 2147483647, %v507
      %v518 = vand.u32 2147483647, %v509
      %v519 = vand.u32 2147483647, %v511
      %v520 = vmul.f32 %v512, %v456
      %v521 = vmul.f32 %v513, %v457
      %v522 = vmul.f32 %v514, %v458
      %v523 = vmul.f32 %v515, %v459
      %v524 = vmul.f32 %v516, %v460
      %v525 = vmul.f32 %v517, %v461
      %v526 = vmul.f32 %v518, %v462
      %v527 = vmul.f32 %v519, %v463
      %v528 = vlaneseq
      %v529 = vshrl.u32 %v528, 7
      %v530 = vadd.s32 %v529, 8
      %v531 = vadd.s32 %v529, 16
      %v532 = vadd.s32 %v529, 24
      %v533 = vadd.s32 %v529, 32
      %v534 = vadd.s32 %v529, 40
      %v535 = vadd.s32 %v529, 48
      %v536 = vadd.s32 %v529, 56
      %s537 = smul.u32 %s18, 64
      %v538 = vstv %s537
      %v539 = vadd.s32 %v529, %v538
      %v540 = vadd.s32 %v530, %v538
      %v541 = vadd.s32 %v531, %v538
      %v542 = vadd.s32 %v532, %v538
      %v543 = vadd.s32 %v533, %v538
      %v544 = vadd.s32 %v534, %v538
      %v545 = vadd.s32 %v535, %v538
      %v546 = vadd.s32 %v536, %v538
      %vm547 = vcmp.lt.s32.totalorder %v539, 72
      %vm548 = vcmp.lt.s32.totalorder %v540, 72
      %vm549 = vcmp.lt.s32.totalorder %v541, 72
      %vm550 = vcmp.lt.s32.totalorder %v542, 72
      %vm551 = vcmp.lt.s32.totalorder %v543, 72
      %vm552 = vcmp.lt.s32.totalorder %v544, 72
      %vm553 = vcmp.lt.s32.totalorder %v545, 72
      %vm554 = vcmp.lt.s32.totalorder %v546, 72
      %v555 = vsel %vm547, %v520, 0.0
      %v556 = vsel %vm548, %v521, 0.0
      %v557 = vsel %vm549, %v522, 0.0
      %v558 = vsel %vm550, %v523, 0.0
      %v559 = vsel %vm551, %v524, 0.0
      %v560 = vsel %vm552, %v525, 0.0
      %v561 = vsel %vm553, %v526, 0.0
      %v562 = vsel %vm554, %v527, 0.0
      %v563 = vsel %vm547, %v456, 0.0
      %v564 = vsel %vm548, %v457, 0.0
      %v565 = vsel %vm549, %v458, 0.0
      %v566 = vsel %vm550, %v459, 0.0
      %v567 = vsel %vm551, %v460, 0.0
      %v568 = vsel %vm552, %v461, 0.0
      %v569 = vsel %vm553, %v462, 0.0
      %v570 = vsel %vm554, %v463, 0.0
      %v571 = vadd.f32 %v555, %v556
      %v572 = vadd.f32 %v571, %v557
      %v573 = vadd.f32 %v572, %v558
      %v574 = vadd.f32 %v573, %v559
      %v575 = vadd.f32 %v574, %v560
      %v576 = vadd.f32 %v575, %v561
      %v577 = vadd.f32 %v576, %v562
      %v578 = vrot.slane %v577, 4
      %v579 = vadd.f32 %v577, %v578
      %v580 = vrot.slane %v579, 2
      %v581 = vadd.f32 %v579, %v580
      %v582 = vrot.slane %v581, 1
      %v583 = vadd.f32 %v581, %v582
      %584 = vst [vmem:[%s336] sm:$0xff] %v583
      %v585 = vadd.f32 %v563, %v564
      %v586 = vadd.f32 %v585, %v565
      %v587 = vadd.f32 %v586, %v566
      %v588 = vadd.f32 %v587, %v567
      %v589 = vadd.f32 %v588, %v568
      %v590 = vadd.f32 %v589, %v569
      %v591 = vadd.f32 %v590, %v570
      %v592 = vrot.slane %v591, 4
      %v593 = vadd.f32 %v591, %v592
      %v594 = vrot.slane %v593, 2
      %v595 = vadd.f32 %v593, %v594
      %v596 = vrot.slane %v595, 1
      %v597 = vadd.f32 %v595, %v596
      %598 = vst [vmem:[%s340] sm:$0xff] %v597
      %p599 = scmp.lt.s32.totalorder %s18, 1
      %s600 = scalar_select %p599, %s18, 1
      %s601 = smul.addr %s600, 8
      %s602 = scalar_lea.vmem %s4, %s601
      %p603 = scmp.lt.s32.totalorder %s18, 1
      %s604 = scalar_select %p603, %s18, 1
      %s605 = smul.addr %s604, 8
      %s606 = scalar_lea.vmem %s5, %s605
      // Predicated region
      $region37: #{lidar_loss.4} parent=35 // pred_check
        %p607 = pneg %p135
      $region38: #{lidar_loss.4} parent=35 // pred_check_branch
        %609 = sbr.rel (%p607) target = $region40
      $region39: #{lidar_loss.4} parent=35 // pred_region
        _
      $region40: #{lidar_loss.4} parent=35 // pred_fallthru
        _
      // Predicated region
      $region41: #{lidar_loss.4} parent=35 // pred_check
        %p610 = pneg %p161
      $region42: #{lidar_loss.4} parent=35 // pred_check_branch
        %612 = sbr.rel (%p610) target = $region44
      $region43: #{lidar_loss.4} parent=35 // pred_region
        _
      $region44: #{lidar_loss.4} parent=35 // pred_fallthru
        _
    $region36: #{lidar_loss.4} parent=5 // pred_fallthru
      _
    %p613 = scmp.le.s32.totalorder 2, %s13
    // Predicated region
    $region45: #{lidar_loss.4} parent=5 // pred_check
      %p614 = pneg %p613
    $region46: #{lidar_loss.4} parent=5 // pred_check_branch
      %616 = sbr.rel (%p614) target = $region48
    $region47: #{lidar_loss.4} parent=5 // pred_region
      %s617 = ssub.s32 %s13, 2
      // Predicated region
      $region49: #{lidar_loss.4} parent=47 // pred_check
        %p618 = pneg %p141
      $region50: #{lidar_loss.4} parent=47 // pred_check_branch
        %620 = sbr.rel (%p618) target = $region52
      $region51: #{lidar_loss.4} parent=47 // pred_region
        %p621 = scmp.lt.s32.totalorder %s19, 1
        %s622 = scalar_select %p621, %s19, 1
        %s623 = smul.addr %s622, 8
        %s624 = scalar_lea.vmem %s4, %s623
      $region52: #{lidar_loss.4} parent=47 // pred_fallthru
        _
      // Predicated region
      $region53: #{lidar_loss.4} parent=47 // pred_check
        %p625 = pneg %p167
      $region54: #{lidar_loss.4} parent=47 // pred_check_branch
        %627 = sbr.rel (%p625) target = $region56
      $region55: #{lidar_loss.4} parent=47 // pred_region
        %p628 = scmp.lt.s32.totalorder %s19, 1
        %s629 = scalar_select %p628, %s19, 1
        %s630 = smul.addr %s629, 8
        %s631 = scalar_lea.vmem %s5, %s630
      $region56: #{lidar_loss.4} parent=47 // pred_fallthru
        _
    $region48: #{lidar_loss.4} parent=5 // pred_fallthru
      _
  $region6: #{lidar_loss.4} parent=0 // loop_footer
    %s17 = sadd.s32 1, %s13
  $region7: #{lidar_loss.4} parent=0 // loop_footer_branch
    %12 = sbr.rel target = $region3
  $region8: #{lidar_loss.4} parent=0 // loop_exit
    _

// kernel: lidar_loss.3
$region0: #{lidar_loss.3}
  #allocation0 [shape = 'u32[]', space=smem, size = 0x4, offset = 0x4, fixed_abs, tag = 'smem constant byte address 0x4 - core index']
  #allocation1 [shape = 'u32[144,128]{1,0:T(1,128)}', space=vmem, size = 0x12000, scoped, tag = 'internal scratch']
  %s0 = inlined_call_operand.vmem [shape: f32[72,128], index: 0, kind: input, shape index: {}]
  %s1 = inlined_call_operand.vmem [shape: f32[72,128], index: 1, kind: input, shape index: {}]
  %s2 = inlined_call_operand.vmem [shape: f32[72,128], index: 2, kind: input, shape index: {}]
  %s3 = inlined_call_operand.vmem [shape: f32[72,128], index: 3, kind: output, shape index: {}]
  %s4 = sld [smem:[#allocation0]]
  $region93: #{lidar_loss.3} parent=0
    _
  %s6 = ssub.s32 1, %s4
  %s7 = scalar_select 0, %s6, %s4
  $region1: #{lidar_loss.3} parent=0
    #allocation2 [shape = 'u8[65536]{0}', space=vmem, size = 0x10000, scoped, tag = 'output window, operand 0']
    loop: start=0, step=1, limit=4
    $region2: #{lidar_loss.3} parent=1 // loop_pre_header
      _
    $region3: #{lidar_loss.3} parent=1 // loop_header
      %s9 = sphi 0, %s13
      %p10 = scmp.ge.s32.totalorder %s9, 4
      %s19 = sphi 0, %s21
      %s22 = sphi 0, %s19
      %s23 = sphi 0, %s22
      %s39 = sphi 0, %s23
      %s45 = sphi 0, %s47
      %s48 = sphi 0, %s45
      %s49 = sphi 0, %s48
      %s65 = sphi 0, %s49
      %s71 = sphi 0, %s73
      %s74 = sphi 0, %s71
      %s75 = sphi 0, %s74
      %s91 = sphi 0, %s75
      %s97 = sphi 0, %s99
      %s100 = sphi 0, %s97
      %s101 = sphi 0, %s100
      %s117 = sphi 0, %s101
    $region4: #{lidar_loss.3} parent=1 // loop_header_branch
      %12 = sbr.rel (%p10) target = $region8
    $region5: #{lidar_loss.3} parent=1 // loop_body
      %s14 = ssub.s32 %s9, 1
      %s15 = ssub.s32 %s9, 2
      %s16 = sadd.s32 %s9, 1
      %s17 = ssub.s32 %s9, %s16
      %p18 = scmp.eq.s32.totalorder %s17, 0
      %s20 = sadd.s32 %s19, 1
      %s21 = scalar_select %p18, %s19, %s20
      %p24 = pneg %p18
      %p25 = scmp.eq.s32.totalorder %s9, 1
      %p26 = por %p24, %p25
      %p27 = scmp.ne.s32.totalorder %s19, %s22
      %p28 = scmp.eq.s32.totalorder %s9, 0
      %p29 = por %p27, %p28
      %p30 = scmp.ne.s32.totalorder %s19, %s22
      %p31 = scmp.eq.s32.totalorder %s14, 1
      %p32 = por %p30, %p31
      %p33 = scmp.ne.s32.totalorder %s22, %s23
      %p34 = scmp.eq.s32.totalorder %s14, 0
      %p35 = por %p33, %p34
      %p36 = scmp.ne.s32.totalorder %s22, %s23
      %p37 = scmp.eq.s32.totalorder %s15, 1
      %p38 = por %p36, %p37
      %p40 = scmp.ne.s32.totalorder %s23, %s39
      %p41 = scmp.eq.s32.totalorder %s15, 0
      %p42 = por %p40, %p41
      %s43 = ssub.s32 %s9, %s16
      %p44 = scmp.eq.s32.totalorder %s43, 0
      %s46 = sadd.s32 %s45, 1
      %s47 = scalar_select %p44, %s45, %s46
      %p50 = pneg %p44
      %p51 = scmp.eq.s32.totalorder %s9, 1
      %p52 = por %p50, %p51
      %p53 = scmp.ne.s32.totalorder %s45, %s48
      %p54 = scmp.eq.s32.totalorder %s9, 0
      %p55 = por %p53, %p54
      %p56 = scmp.ne.s32.totalorder %s45, %s48
      %p57 = scmp.eq.s32.totalorder %s14, 1
      %p58 = por %p56, %p57
      %p59 = scmp.ne.s32.totalorder %s48, %s49
      %p60 = scmp.eq.s32.totalorder %s14, 0
      %p61 = por %p59, %p60
      %p62 = scmp.ne.s32.totalorder %s48, %s49
      %p63 = scmp.eq.s32.totalorder %s15, 1
      %p64 = por %p62, %p63
      %p66 = scmp.ne.s32.totalorder %s49, %s65
      %p67 = scmp.eq.s32.totalorder %s15, 0
      %p68 = por %p66, %p67
      %s69 = ssub.s32 %s9, %s16
      %p70 = scmp.eq.s32.totalorder %s69, 0
      %s72 = sadd.s32 %s71, 1
      %s73 = scalar_select %p70, %s71, %s72
      %p76 = pneg %p70
      %p77 = scmp.eq.s32.totalorder %s9, 1
      %p78 = por %p76, %p77
      %p79 = scmp.ne.s32.totalorder %s71, %s74
      %p80 = scmp.eq.s32.totalorder %s9, 0
      %p81 = por %p79, %p80
      %p82 = scmp.ne.s32.totalorder %s71, %s74
      %p83 = scmp.eq.s32.totalorder %s14, 1
      %p84 = por %p82, %p83
      %p85 = scmp.ne.s32.totalorder %s74, %s75
      %p86 = scmp.eq.s32.totalorder %s14, 0
      %p87 = por %p85, %p86
      %p88 = scmp.ne.s32.totalorder %s74, %s75
      %p89 = scmp.eq.s32.totalorder %s15, 1
      %p90 = por %p88, %p89
      %p92 = scmp.ne.s32.totalorder %s75, %s91
      %p93 = scmp.eq.s32.totalorder %s15, 0
      %p94 = por %p92, %p93
      %s95 = ssub.s32 %s9, %s16
      %p96 = scmp.eq.s32.totalorder %s95, 0
      %s98 = sadd.s32 %s97, 1
      %s99 = scalar_select %p96, %s97, %s98
      %p102 = pneg %p96
      %p103 = scmp.eq.s32.totalorder %s9, 1
      %p104 = por %p102, %p103
      %p105 = scmp.ne.s32.totalorder %s97, %s100
      %p106 = scmp.eq.s32.totalorder %s9, 0
      %p107 = por %p105, %p106
      %p108 = scmp.ne.s32.totalorder %s97, %s100
      %p109 = scmp.eq.s32.totalorder %s14, 1
      %p110 = por %p108, %p109
      %p111 = scmp.ne.s32.totalorder %s100, %s101
      %p112 = scmp.eq.s32.totalorder %s14, 0
      %p113 = por %p111, %p112
      %p114 = scmp.ne.s32.totalorder %s100, %s101
      %p115 = scmp.eq.s32.totalorder %s15, 1
      %p116 = por %p114, %p115
      %p118 = scmp.ne.s32.totalorder %s101, %s117
      %p119 = scmp.eq.s32.totalorder %s15, 0
      %p120 = por %p118, %p119
      %p121 = scmp.le.s32.totalorder 1, %s9
      %p122 = scmp.lt.s32.totalorder %s9, 3
      %p123 = pnand %p121, %p122
      %p124 = pneg %p123
      // Predicated region
      $region9: #{lidar_loss.3} parent=5 // pred_check
        _
      $region10: #{lidar_loss.3} parent=5 // pred_check_branch
        %126 = sbr.rel (%p123) target = $region12
      $region11: #{lidar_loss.3} parent=5 // pred_region
        %s127 = ssub.s32 %s9, 1
      $region12: #{lidar_loss.3} parent=5 // pred_fallthru
        _
      %p128 = scmp.lt.s32.totalorder %s9, 2
      // Predicated region
      $region13: #{lidar_loss.3} parent=5 // pred_check
        %p129 = pneg %p128
      $region14: #{lidar_loss.3} parent=5 // pred_check_branch
        %131 = sbr.rel (%p129) target = $region16
      $region15: #{lidar_loss.3} parent=5 // pred_region
        // Predicated region
        $region17: #{lidar_loss.3} parent=15 // pred_check
          %p132 = pneg %p29
        $region18: #{lidar_loss.3} parent=15 // pred_check_branch
          %134 = sbr.rel (%p132) target = $region20
        $region19: #{lidar_loss.3} parent=15 // pred_region
          %s135 = smul.u32 8, %s9
          %s136 = ssub.s32 9, %s135
          %p137 = scmp.lt.s32.totalorder %s136, 8
          %s138 = scalar_select %p137, %s136, 8
          %s139 = smul.u32 128, %s138
          %p140 = scmp.lt.s32.totalorder %s135, 8
          %s141 = scalar_select %p140, %s135, 8
          %s142 = smul.addr %s141, 8
          %s143 = scalar_lea.vmem %s0, %s142
          %s144 = smul.u32 8, %s9
          %s145 = ssub.s32 9, %s144
          %p146 = scmp.lt.s32.totalorder %s145, 8
          %s147 = scalar_select %p146, %s145, 8
          %s148 = smul.u32 128, %s147
        $region20: #{lidar_loss.3} parent=15 // pred_fallthru
          _
        // Predicated region
        $region21: #{lidar_loss.3} parent=15 // pred_check
          %p149 = pneg %p55
        $region22: #{lidar_loss.3} parent=15 // pred_check_branch
          %151 = sbr.rel (%p149) target = $region24
        $region23: #{lidar_loss.3} parent=15 // pred_region
          %s152 = smul.u32 8, %s9
          %s153 = ssub.s32 9, %s152
          %p154 = scmp.lt.s32.totalorder %s153, 8
          %s155 = scalar_select %p154, %s153, 8
          %s156 = smul.u32 128, %s155
          %p157 = scmp.lt.s32.totalorder %s152, 8
          %s158 = scalar_select %p157, %s152, 8
          %s159 = smul.addr %s158, 8
          %s160 = scalar_lea.vmem %s1, %s159
          %s161 = smul.u32 8, %s9
          %s162 = ssub.s32 9, %s161
          %p163 = scmp.lt.s32.totalorder %s162, 8
          %s164 = scalar_select %p163, %s162, 8
          %s165 = smul.u32 128, %s164
        $region24: #{lidar_loss.3} parent=15 // pred_fallthru
          _
        // Predicated region
        $region25: #{lidar_loss.3} parent=15 // pred_check
          %p166 = pneg %p81
        $region26: #{lidar_loss.3} parent=15 // pred_check_branch
          %168 = sbr.rel (%p166) target = $region28
        $region27: #{lidar_loss.3} parent=15 // pred_region
          %s169 = smul.u32 8, %s9
          %s170 = ssub.s32 9, %s169
          %p171 = scmp.lt.s32.totalorder %s170, 8
          %s172 = scalar_select %p171, %s170, 8
          %s173 = smul.u32 128, %s172
          %p174 = scmp.lt.s32.totalorder %s169, 8
          %s175 = scalar_select %p174, %s169, 8
          %s176 = smul.addr %s175, 8
          %s177 = scalar_lea.vmem %s2, %s176
          %s178 = smul.u32 8, %s9
          %s179 = ssub.s32 9, %s178
          %p180 = scmp.lt.s32.totalorder %s179, 8
          %s181 = scalar_select %p180, %s179, 8
          %s182 = smul.u32 128, %s181
        $region28: #{lidar_loss.3} parent=15 // pred_fallthru
          _
      $region16: #{lidar_loss.3} parent=5 // pred_fallthru
        _
      %p183 = scmp.le.s32.totalorder 1, %s9
      %p184 = scmp.lt.s32.totalorder %s9, 3
      %p185 = pnand %p183, %p184
      %p186 = pneg %p185
      // Predicated region
      $region29: #{lidar_loss.3} parent=5 // pred_check
        _
      $region30: #{lidar_loss.3} parent=5 // pred_check_branch
        %188 = sbr.rel (%p185) target = $region32
      $region31: #{lidar_loss.3} parent=5 // pred_region
        %s189 = ssub.s32 %s9, 1
        %s190 = smul.u32 8, %s14
        %s191 = ssub.s32 9, %s190
        %p192 = scmp.lt.s32.totalorder %s191, 8
        %s193 = scalar_select %p192, %s191, 8
        %s194 = smul.u32 128, %s193
        %p195 = scmp.lt.s32.totalorder %s190, 8
        %s196 = scalar_select %p195, %s190, 8
        %s197 = smul.addr %s196, 8
        %s198 = scalar_lea.vmem %s0, %s197
        %p199 = pneg %p35
        %p200 = pneg %p32
        %s201 = smul.u32 8, %s14
        %s202 = ssub.s32 9, %s201
        %p203 = scmp.lt.s32.totalorder %s202, 8
        %s204 = scalar_select %p203, %s202, 8
        %s205 = smul.u32 128, %s204
        %p206 = scmp.lt.s32.totalorder %s201, 8
        %s207 = scalar_select %p206, %s201, 8
        %s208 = smul.addr %s207, 8
        %s209 = scalar_lea.vmem %s1, %s208
        %p210 = pneg %p61
        %p211 = pneg %p58
        %s212 = smul.u32 8, %s14
        %s213 = ssub.s32 9, %s212
        %p214 = scmp.lt.s32.totalorder %s213, 8
        %s215 = scalar_select %p214, %s213, 8
        %s216 = smul.u32 128, %s215
        %p217 = scmp.lt.s32.totalorder %s212, 8
        %s218 = scalar_select %p217, %s212, 8
        %s219 = smul.addr %s218, 8
        %s220 = scalar_lea.vmem %s2, %s219
        %p221 = pneg %p87
        %p222 = pneg %p84
        %p223 = pneg %p113
        %p224 = pneg %p110
        %s225 = sand.u32 %s100, 1
        %s226 = sand.u32 %s100, 1
        %s227 = smul.addr %s226, 64
        %s228 = scalar_lea.vmem [#allocation2], %s227
        %s229 = smul.u32 8, %s14
        %s230 = ssub.s32 9, %s229
        %p231 = scmp.lt.s32.totalorder %s230, 8
        %s232 = scalar_select %p231, %s230, 8
        %s233 = smul.u32 128, %s232
        %p234 = scmp.lt.s32.totalorder %s229, 8
        %s235 = scalar_select %p234, %s229, 8
        %s236 = smul.addr %s235, 8
        %s237 = scalar_lea.vmem %s0, %s236
        %s238 = smul.u32 8, %s14
        %s239 = ssub.s32 9, %s238
        %p240 = scmp.lt.s32.totalorder %s239, 8
        %s241 = scalar_select %p240, %s239, 8
        %s242 = smul.u32 128, %s241
        %s243 = smul.u32 8, %s14
        %s244 = ssub.s32 9, %s243
        %p245 = scmp.lt.s32.totalorder %s244, 8
        %s246 = scalar_select %p245, %s244, 8
        %s247 = smul.u32 128, %s246
        %p248 = scmp.lt.s32.totalorder %s243, 8
        %s249 = scalar_select %p248, %s243, 8
        %s250 = smul.addr %s249, 8
        %s251 = scalar_lea.vmem %s1, %s250
        %s252 = smul.u32 8, %s14
        %s253 = ssub.s32 9, %s252
        %p254 = scmp.lt.s32.totalorder %s253, 8
        %s255 = scalar_select %p254, %s253, 8
        %s256 = smul.u32 128, %s255
        %s257 = smul.u32 8, %s14
        %s258 = ssub.s32 9, %s257
        %p259 = scmp.lt.s32.totalorder %s258, 8
        %s260 = scalar_select %p259, %s258, 8
        %s261 = smul.u32 128, %s260
        %p262 = scmp.lt.s32.totalorder %s257, 8
        %s263 = scalar_select %p262, %s257, 8
        %s264 = smul.addr %s263, 8
        %s265 = scalar_lea.vmem %s2, %s264
        %s266 = smul.u32 8, %s14
        %s267 = ssub.s32 9, %s266
        %p268 = scmp.lt.s32.totalorder %s267, 8
        %s269 = scalar_select %p268, %s267, 8
        %s270 = smul.u32 128, %s269
        %s271 = smul.u32 8, %s14
        %s272 = ssub.s32 9, %s271
        %p273 = scmp.lt.s32.totalorder %s272, 8
        %s274 = scalar_select %p273, %s272, 8
        %s275 = smul.u32 128, %s274
        %v276 = vld [vmem:[%s237] sm:$0xff]
        %v277 = vld [vmem:[%s237 + $0x8] sm:$0xff]
        %v278 = vld [vmem:[%s237 + $0x10] sm:$0xff]
        %v279 = vld [vmem:[%s237 + $0x18] sm:$0xff]
        %v280 = vld [vmem:[%s237 + $0x20] sm:$0xff]
        %v281 = vld [vmem:[%s237 + $0x28] sm:$0xff]
        %v282 = vld [vmem:[%s237 + $0x30] sm:$0xff]
        %v283 = vld [vmem:[%s237 + $0x38] sm:$0xff]
        %v284 = vld [vmem:[%s251] sm:$0xff]
        %v285 = vld [vmem:[%s251 + $0x8] sm:$0xff]
        %v286 = vld [vmem:[%s251 + $0x10] sm:$0xff]
        %v287 = vld [vmem:[%s251 + $0x18] sm:$0xff]
        %v288 = vld [vmem:[%s251 + $0x20] sm:$0xff]
        %v289 = vld [vmem:[%s251 + $0x28] sm:$0xff]
        %v290 = vld [vmem:[%s251 + $0x30] sm:$0xff]
        %v291 = vld [vmem:[%s251 + $0x38] sm:$0xff]
        %v292 = vld [vmem:[%s265] sm:$0xff]
        %v293 = vld [vmem:[%s265 + $0x8] sm:$0xff]
        %v294 = vld [vmem:[%s265 + $0x10] sm:$0xff]
        %v295 = vld [vmem:[%s265 + $0x18] sm:$0xff]
        %v296 = vld [vmem:[%s265 + $0x20] sm:$0xff]
        %v297 = vld [vmem:[%s265 + $0x28] sm:$0xff]
        %v298 = vld [vmem:[%s265 + $0x30] sm:$0xff]
        %v299 = vld [vmem:[%s265 + $0x38] sm:$0xff]
        %vm300 = vcmp.gt.f32.partialorder %v292, 1e-07
        %vm301 = vcmp.gt.f32.partialorder %v293, 1e-07
        %vm302 = vcmp.gt.f32.partialorder %v294, 1e-07
        %vm303 = vcmp.gt.f32.partialorder %v295, 1e-07
        %vm304 = vcmp.gt.f32.partialorder %v296, 1e-07
        %vm305 = vcmp.gt.f32.partialorder %v297, 1e-07
        %vm306 = vcmp.gt.f32.partialorder %v298, 1e-07
        %vm307 = vcmp.gt.f32.partialorder %v299, 1e-07
        %vm308 = vcmp.gt.f32.partialorder %v284, 0.0
        %vm309 = vcmp.gt.f32.partialorder %v285, 0.0
        %vm310 = vcmp.gt.f32.partialorder %v286, 0.0
        %vm311 = vcmp.gt.f32.partialorder %v287, 0.0
        %vm312 = vcmp.gt.f32.partialorder %v288, 0.0
        %vm313 = vcmp.gt.f32.partialorder %v289, 0.0
        %vm314 = vcmp.gt.f32.partialorder %v290, 0.0
        %vm315 = vcmp.gt.f32.partialorder %v291, 0.0
        %vm316 = vmand %vm300, %vm308
        %vm317 = vmand %vm301, %vm309
        %vm318 = vmand %vm302, %vm310
        %vm319 = vmand %vm303, %vm311
        %vm320 = vmand %vm304, %vm312
        %vm321 = vmand %vm305, %vm313
        %vm322 = vmand %vm306, %vm314
        %vm323 = vmand %vm307, %vm315
        %v324 = vsel %vm316, 1, 0
        %v325 = vsel %vm317, 1, 0
        %v326 = vsel %vm318, 1, 0
        %v327 = vsel %vm319, 1, 0
        %v328 = vsel %vm320, 1, 0
        %v329 = vsel %vm321, 1, 0
        %v330 = vsel %vm322, 1, 0
        %v331 = vsel %vm323, 1, 0
        %v332 = vcvt.s32.f32 %v324
        %v333 = vcvt.s32.f32 %v325
        %v334 = vcvt.s32.f32 %v326
        %v335 = vcvt.s32.f32 %v327
        %v336 = vcvt.s32.f32 %v328
        %v337 = vcvt.s32.f32 %v329
        %v338 = vcvt.s32.f32 %v330
        %v339 = vcvt.s32.f32 %v331
        %v340 = vsub.f32 %v276, %v284
        %v341 = vsub.f32 %v277, %v285
        %v342 = vsub.f32 %v278, %v286
        %v343 = vsub.f32 %v279, %v287
        %v344 = vsub.f32 %v280, %v288
        %v345 = vsub.f32 %v281, %v289
        %v346 = vsub.f32 %v282, %v290
        %v347 = vsub.f32 %v283, %v291
        %v348 = vand.u32 2147483647, %v340
        %v349 = vand.u32 2147483647, %v341
        %v350 = vand.u32 2147483647, %v342
        %v351 = vand.u32 2147483647, %v343
        %v352 = vand.u32 2147483647, %v344
        %v353 = vand.u32 2147483647, %v345
        %v354 = vand.u32 2147483647, %v346
        %v355 = vand.u32 2147483647, %v347
        %v356 = vmul.f32 %v348, %v332
        %v357 = vmul.f32 %v349, %v333
        %v358 = vmul.f32 %v350, %v334
        %v359 = vmul.f32 %v351, %v335
        %v360 = vmul.f32 %v352, %v336
        %v361 = vmul.f32 %v353, %v337
        %v362 = vmul.f32 %v354, %v338
        %v363 = vmul.f32 %v355, %v339
        %364 = vst [vmem:[%s228] sm:$0xff] %v356
        %365 = vst [vmem:[%s228 + $0x8] sm:$0xff] %v357
        %366 = vst [vmem:[%s228 + $0x10] sm:$0xff] %v358
        %367 = vst [vmem:[%s228 + $0x18] sm:$0xff] %v359
        %368 = vst [vmem:[%s228 + $0x20] sm:$0xff] %v360
        %369 = vst [vmem:[%s228 + $0x28] sm:$0xff] %v361
        %370 = vst [vmem:[%s228 + $0x30] sm:$0xff] %v362
        %371 = vst [vmem:[%s228 + $0x38] sm:$0xff] %v363
        %s372 = sand.u32 %s100, 1
        %s373 = sand.u32 %s100, 1
        %s374 = smul.addr %s373, 64
        %s375 = scalar_lea.vmem [#allocation2], %s374
        // Predicated region
        $region33: #{lidar_loss.3} parent=31 // pred_check
          %p376 = pneg %p110
        $region34: #{lidar_loss.3} parent=31 // pred_check_branch
          %378 = sbr.rel (%p376) target = $region36
        $region35: #{lidar_loss.3} parent=31 // pred_region
          %s379 = smul.u32 8, %s14
          %s380 = ssub.s32 9, %s379
          %p381 = scmp.lt.s32.totalorder %s380, 8
          %s382 = scalar_select %p381, %s380, 8
          %s383 = smul.u32 128, %s382
          %p384 = scmp.ne.s32.totalorder 0, %s383
          %s385 = smul.addr %s379, 8
          %s386 = scalar_lea.vmem %s3, %s385
          // Predicated region
          $region37: #{lidar_loss.3} parent=35 // pred_check
            %p387 = pneg %p384
          $region38: #{lidar_loss.3} parent=35 // pred_check_branch
            %389 = sbr.rel (%p387) target = $region40
          $region39: #{lidar_loss.3} parent=35 // pred_region
            // Predicated region
            $region41: #{lidar_loss.3} parent=39 // pred_check
              _
            $region42: #{lidar_loss.3} parent=39 // pred_check_branch
              %391 = sbr.rel (0) target = $region44
            $region43: #{lidar_loss.3} parent=39 // pred_region
              // Predicated region
              $region63: #{lidar_loss.3} parent=43 // pred_check
                _
              $region64: #{lidar_loss.3} parent=43 // pred_check_branch
                %454 = sbr.rel (0) target = $region66
              $region65: #{lidar_loss.3} parent=43 // pred_region
                %s455 = sshrl.u32 %s382, 3
                // While loop
                $region67: #{lidar_loss.3} parent=65 // loop_pre_header
                  _
                $region68: #{lidar_loss.3} parent=65 // loop_header
                  %s457 = sphi 0, %s459
                  %p458 = scmp.ge.s32.totalorder %s457, %s455
                  %s462 = sphi 0, %s483
                  %s463 = sphi %s375, %s486
                  %s464 = sphi %s386, %s487
                $region69: #{lidar_loss.3} parent=65 // loop_header_branch
                  %461 = sbr.rel (%p458) target = $region73
                $region70: #{lidar_loss.3} parent=65 // loop_body
                  %v465 = vld [vmem:[%s463] sm:$0xff]
                  %466 = vst [vmem:[%s464] sm:$0xff] %v465
                  %v467 = vld [vmem:[%s463 + $0x8] sm:$0xff]
                  %468 = vst [vmem:[%s464 + $0x8] sm:$0xff] %v467
                  %v469 = vld [vmem:[%s463 + $0x10] sm:$0xff]
                  %470 = vst [vmem:[%s464 + $0x10] sm:$0xff] %v469
                  %v471 = vld [vmem:[%s463 + $0x18] sm:$0xff]
                  %472 = vst [vmem:[%s464 + $0x18] sm:$0xff] %v471
                  %v473 = vld [vmem:[%s463 + $0x20] sm:$0xff]
                  %474 = vst [vmem:[%s464 + $0x20] sm:$0xff] %v473
                  %v475 = vld [vmem:[%s463 + $0x28] sm:$0xff]
                  %476 = vst [vmem:[%s464 + $0x28] sm:$0xff] %v475
                  %v477 = vld [vmem:[%s463 + $0x30] sm:$0xff]
                  %478 = vst [vmem:[%s464 + $0x30] sm:$0xff] %v477
                  %v479 = vld [vmem:[%s463 + $0x38] sm:$0xff]
                  %480 = vst [vmem:[%s464 + $0x38] sm:$0xff] %v479
                  %s481 = sadd.s32 1, %s462
                  %p482 = scmp.ge.s32.totalorder %s481, %s455
                  %s483 = scalar_select %p482, 0, %s481
                  %s484 = smul.u32 %s483, 64
                  %s485 = smul.u32 %s483, 64
                  %s486 = scalar_lea.vmem %s375, %s484 [#allocation2]
                  %s487 = scalar_lea.vmem %s386, %s485
                $region71: #{lidar_loss.3} parent=65 // loop_footer
                  %s459 = sadd.s32 %s457, 1
                $region72: #{lidar_loss.3} parent=65 // loop_footer_branch
                  %456 = sbr.rel target = $region68
                $region73: #{lidar_loss.3} parent=65 // loop_exit
                  _
                %s488 = sshrl.u32 %s382, 3
                %s489 = sand.u32 %s382, 7
                %s490 = smul.u32 %s488, 8
                %s491 = smul.u32 8, %s490
                %s492 = scalar_lea.vmem %s375, %s491 [#allocation2]
                %s493 = smul.u32 8, %s490
                %s494 = scalar_lea.vmem %s386, %s493
                // While loop
                $region74: #{lidar_loss.3} parent=65 // loop_pre_header
                  _
                $region75: #{lidar_loss.3} parent=65 // loop_header
                  %s496 = sphi 0, %s498
                  %p497 = scmp.ge.s32.totalorder %s496, %s489
                  %s501 = sphi 0, %s508
                  %s502 = sphi %s492, %s511
                  %s503 = sphi %s494, %s512
                $region76: #{lidar_loss.3} parent=65 // loop_header_branch
                  %500 = sbr.rel (%p497) target = $region80
                $region77: #{lidar_loss.3} parent=65 // loop_body
                  %v504 = vld [vmem:[%s502] sm:$0xff]
                  %505 = vst [vmem:[%s503] sm:$0xff] %v504
                  %s506 = sadd.s32 1, %s501
                  %p507 = scmp.ge.s32.totalorder %s506, %s489
                  %s508 = scalar_select %p507, 0, %s506
                  %s509 = smul.u32 %s508, 8
                  %s510 = smul.u32 %s508, 8
                  %s511 = scalar_lea.vmem %s492, %s509 [#allocation2]
                  %s512 = scalar_lea.vmem %s494, %s510
                $region78: #{lidar_loss.3} parent=65 // loop_footer
                  %s498 = sadd.s32 %s496, 1
                $region79: #{lidar_loss.3} parent=65 // loop_footer_branch
                  %495 = sbr.rel target = $region75
                $region80: #{lidar_loss.3} parent=65 // loop_exit
                  _
              $region66: #{lidar_loss.3} parent=43 // pred_fallthru
                _
              // Predicated region
              $region81: #{lidar_loss.3} parent=43 // pred_check
                _
              $region82: #{lidar_loss.3} parent=43 // pred_check_branch
                %514 = sbr.rel target = $region84
              $region83: #{lidar_loss.3} parent=43 // pred_region
                _
              $region84: #{lidar_loss.3} parent=43 // pred_fallthru
                _
            $region44: #{lidar_loss.3} parent=39 // pred_fallthru
              _
            // Predicated region
            $region45: #{lidar_loss.3} parent=39 // pred_check
              _
            $region46: #{lidar_loss.3} parent=39 // pred_check_branch
              %393 = sbr.rel target = $region48
            $region47: #{lidar_loss.3} parent=39 // pred_region
              %s395 = sshrl.u32 %s382, 3
              // While loop
              $region49: #{lidar_loss.3} parent=47 // loop_pre_header
                _
              $region50: #{lidar_loss.3} parent=47 // loop_header
                %s397 = sphi 0, %s399
                %p398 = scmp.ge.s32.totalorder %s397, %s395
                %s402 = sphi 0, %s423
                %s403 = sphi %s375, %s426
                %s404 = sphi %s386, %s427
              $region51: #{lidar_loss.3} parent=47 // loop_header_branch
                %401 = sbr.rel (%p398) target = $region55
              $region52: #{lidar_loss.3} parent=47 // loop_body
                %v405 = vld [vmem:[%s403] sm:$0xff]
                %406 = vst [vmem:[%s404] sm:$0xff] %v405
                %v407 = vld [vmem:[%s403 + $0x8] sm:$0xff]
                %408 = vst [vmem:[%s404 + $0x8] sm:$0xff] %v407
                %v409 = vld [vmem:[%s403 + $0x10] sm:$0xff]
                %410 = vst [vmem:[%s404 + $0x10] sm:$0xff] %v409
                %v411 = vld [vmem:[%s403 + $0x18] sm:$0xff]
                %412 = vst [vmem:[%s404 + $0x18] sm:$0xff] %v411
                %v413 = vld [vmem:[%s403 + $0x20] sm:$0xff]
                %414 = vst [vmem:[%s404 + $0x20] sm:$0xff] %v413
                %v415 = vld [vmem:[%s403 + $0x28] sm:$0xff]
                %416 = vst [vmem:[%s404 + $0x28] sm:$0xff] %v415
                %v417 = vld [vmem:[%s403 + $0x30] sm:$0xff]
                %418 = vst [vmem:[%s404 + $0x30] sm:$0xff] %v417
                %v419 = vld [vmem:[%s403 + $0x38] sm:$0xff]
                %420 = vst [vmem:[%s404 + $0x38] sm:$0xff] %v419
                %s421 = sadd.s32 1, %s402
                %p422 = scmp.ge.s32.totalorder %s421, %s395
                %s423 = scalar_select %p422, 0, %s421
                %s424 = smul.u32 %s423, 64
                %s425 = smul.u32 %s423, 64
                %s426 = scalar_lea.vmem %s375, %s424 [#allocation2]
                %s427 = scalar_lea.vmem %s386, %s425
              $region53: #{lidar_loss.3} parent=47 // loop_footer
                %s399 = sadd.s32 %s397, 1
              $region54: #{lidar_loss.3} parent=47 // loop_footer_branch
                %396 = sbr.rel target = $region50
              $region55: #{lidar_loss.3} parent=47 // loop_exit
                _
              %s428 = sshrl.u32 %s382, 3
              %s429 = sand.u32 %s382, 7
              %s430 = smul.u32 %s428, 8
              %s431 = smul.u32 8, %s430
              %s432 = scalar_lea.vmem %s375, %s431 [#allocation2]
              %s433 = smul.u32 8, %s430
              %s434 = scalar_lea.vmem %s386, %s433
              // While loop
              $region56: #{lidar_loss.3} parent=47 // loop_pre_header
                _
              $region57: #{lidar_loss.3} parent=47 // loop_header
                %s436 = sphi 0, %s438
                %p437 = scmp.ge.s32.totalorder %s436, %s429
                %s441 = sphi 0, %s448
                %s442 = sphi %s432, %s451
                %s443 = sphi %s434, %s452
              $region58: #{lidar_loss.3} parent=47 // loop_header_branch
                %440 = sbr.rel (%p437) target = $region62
              $region59: #{lidar_loss.3} parent=47 // loop_body
                %v444 = vld [vmem:[%s442] sm:$0xff]
                %445 = vst [vmem:[%s443] sm:$0xff] %v444
                %s446 = sadd.s32 1, %s441
                %p447 = scmp.ge.s32.totalorder %s446, %s429
                %s448 = scalar_select %p447, 0, %s446
                %s449 = smul.u32 %s448, 8
                %s450 = smul.u32 %s448, 8
                %s451 = scalar_lea.vmem %s432, %s449 [#allocation2]
                %s452 = scalar_lea.vmem %s434, %s450
              $region60: #{lidar_loss.3} parent=47 // loop_footer
                %s438 = sadd.s32 %s436, 1
              $region61: #{lidar_loss.3} parent=47 // loop_footer_branch
                %435 = sbr.rel target = $region57
              $region62: #{lidar_loss.3} parent=47 // loop_exit
                _
            $region48: #{lidar_loss.3} parent=39 // pred_fallthru
              _
          $region40: #{lidar_loss.3} parent=35 // pred_fallthru
            _
          %515 = vnop
        $region36: #{lidar_loss.3} parent=31 // pred_fallthru
          _
      $region32: #{lidar_loss.3} parent=5 // pred_fallthru
        _
      %p516 = scmp.le.s32.totalorder 2, %s9
      // Predicated region
      $region85: #{lidar_loss.3} parent=5 // pred_check
        %p517 = pneg %p516
      $region86: #{lidar_loss.3} parent=5 // pred_check_branch
        %519 = sbr.rel (%p517) target = $region88
      $region87: #{lidar_loss.3} parent=5 // pred_region
        %s520 = ssub.s32 %s9, 2
        // Predicated region
        $region89: #{lidar_loss.3} parent=87 // pred_check
          %p521 = pneg %p116
        $region90: #{lidar_loss.3} parent=87 // pred_check_branch
          %523 = sbr.rel (%p521) target = $region92
        $region91: #{lidar_loss.3} parent=87 // pred_region
          %s524 = sand.u32 %s101, 1
          %s525 = sand.u32 %s101, 1
          %s526 = smul.addr %s525, 64
          %s527 = scalar_lea.vmem [#allocation2], %s526
        $region92: #{lidar_loss.3} parent=87 // pred_fallthru
          _
      $region88: #{lidar_loss.3} parent=5 // pred_fallthru
        _
    $region6: #{lidar_loss.3} parent=1 // loop_footer
      %s13 = sadd.s32 1, %s9
    $region7: #{lidar_loss.3} parent=1 // loop_footer_branch
      %8 = sbr.rel target = $region3
    $region8: #{lidar_loss.3} parent=1 // loop_exit
      _

// kernel: lidar_loss.5
$region0: #{lidar_loss.5}
  #allocation0 [shape = 'u32[]', space=smem, size = 0x4, offset = 0x4, fixed_abs, tag = 'smem constant byte address 0x4 - core index']
  #allocation1 [shape = 'u32[144,128]{1,0:T(1,128)}', space=vmem, size = 0x12000, scoped, tag = 'internal scratch']
  %s0 = inlined_call_operand.vmem [shape: f32[100,128], index: 0, kind: input, shape index: {}]
  %s1 = inlined_call_operand.vmem [shape: f32[100,128], index: 1, kind: input, shape index: {}]
  %s2 = inlined_call_operand.vmem [shape: f32[100,1], index: 2, kind: input, shape index: {}]
  %s3 = inlined_call_operand.vmem [shape: f32[100,1], index: 3, kind: input, shape index: {}]
  %s4 = inlined_call_operand.vmem [shape: f32[16,128], index: 4, kind: output, shape index: {0}]
  %s5 = inlined_call_operand.vmem [shape: f32[16,128], index: 5, kind: output, shape index: {1}]
  %6 = xla_tuple %s4, %s5
  %s7 = sld [smem:[#allocation0]]
  $region57: #{lidar_loss.5} parent=0
    _
  %s9 = ssub.s32 1, %s7
  %s10 = scalar_select 0, %s9, %s7
  loop: start=0, step=1, limit=4
  $region2: #{lidar_loss.5} parent=0 // loop_pre_header
    _
  $region3: #{lidar_loss.5} parent=0 // loop_header
    %s12 = sphi 0, %s16
    %p13 = scmp.ge.s32.totalorder %s12, 4
    %s22 = sphi 0, %s24
    %s25 = sphi 0, %s22
    %s26 = sphi 0, %s25
    %s42 = sphi 0, %s26
    %s48 = sphi 0, %s50
    %s51 = sphi 0, %s48
    %s52 = sphi 0, %s51
    %s68 = sphi 0, %s52
    %s74 = sphi 0, %s76
    %s77 = sphi 0, %s74
    %s78 = sphi 0, %s77
    %s94 = sphi 0, %s78
    %s100 = sphi 0, %s102
    %s103 = sphi 0, %s100
    %s104 = sphi 0, %s103
    %s120 = sphi 0, %s104
    %s126 = sphi 0, %s128
    %s129 = sphi 0, %s126
    %s130 = sphi 0, %s129
    %s146 = sphi 0, %s130
    %s152 = sphi 0, %s154
    %s155 = sphi 0, %s152
    %s156 = sphi 0, %s155
    %s172 = sphi 0, %s156
  $region4: #{lidar_loss.5} parent=0 // loop_header_branch
    %15 = sbr.rel (%p13) target = $region8
  $region5: #{lidar_loss.5} parent=0 // loop_body
    %s17 = ssub.s32 %s12, 1
    %s18 = ssub.s32 %s12, 2
    %s19 = sadd.s32 %s12, 1
    %s20 = ssub.s32 %s12, %s19
    %p21 = scmp.eq.s32.totalorder %s20, 0
    %s23 = sadd.s32 %s22, 1
    %s24 = scalar_select %p21, %s22, %s23
    %p27 = pneg %p21
    %p28 = scmp.eq.s32.totalorder %s12, 1
    %p29 = por %p27, %p28
    %p30 = scmp.ne.s32.totalorder %s22, %s25
    %p31 = scmp.eq.s32.totalorder %s12, 0
    %p32 = por %p30, %p31
    %p33 = scmp.ne.s32.totalorder %s22, %s25
    %p34 = scmp.eq.s32.totalorder %s17, 1
    %p35 = por %p33, %p34
    %p36 = scmp.ne.s32.totalorder %s25, %s26
    %p37 = scmp.eq.s32.totalorder %s17, 0
    %p38 = por %p36, %p37
    %p39 = scmp.ne.s32.totalorder %s25, %s26
    %p40 = scmp.eq.s32.totalorder %s18, 1
    %p41 = por %p39, %p40
    %p43 = scmp.ne.s32.totalorder %s26, %s42
    %p44 = scmp.eq.s32.totalorder %s18, 0
    %p45 = por %p43, %p44
    %s46 = ssub.s32 %s12, %s19
    %p47 = scmp.eq.s32.totalorder %s46, 0
    %s49 = sadd.s32 %s48, 1
    %s50 = scalar_select %p47, %s48, %s49
    %p53 = pneg %p47
    %p54 = scmp.eq.s32.totalorder %s12, 1
    %p55 = por %p53, %p54
    %p56 = scmp.ne.s32.totalorder %s48, %s51
    %p57 = scmp.eq.s32.totalorder %s12, 0
    %p58 = por %p56, %p57
    %p59 = scmp.ne.s32.totalorder %s48, %s51
    %p60 = scmp.eq.s32.totalorder %s17, 1
    %p61 = por %p59, %p60
    %p62 = scmp.ne.s32.totalorder %s51, %s52
    %p63 = scmp.eq.s32.totalorder %s17, 0
    %p64 = por %p62, %p63
    %p65 = scmp.ne.s32.totalorder %s51, %s52
    %p66 = scmp.eq.s32.totalorder %s18, 1
    %p67 = por %p65, %p66
    %p69 = scmp.ne.s32.totalorder %s52, %s68
    %p70 = scmp.eq.s32.totalorder %s18, 0
    %p71 = por %p69, %p70
    %s72 = ssub.s32 %s12, %s19
    %p73 = scmp.eq.s32.totalorder %s72, 0
    %s75 = sadd.s32 %s74, 1
    %s76 = scalar_select %p73, %s74, %s75
    %p79 = pneg %p73
    %p80 = scmp.eq.s32.totalorder %s12, 1
    %p81 = por %p79, %p80
    %p82 = scmp.ne.s32.totalorder %s74, %s77
    %p83 = scmp.eq.s32.totalorder %s12, 0
    %p84 = por %p82, %p83
    %p85 = scmp.ne.s32.totalorder %s74, %s77
    %p86 = scmp.eq.s32.totalorder %s17, 1
    %p87 = por %p85, %p86
    %p88 = scmp.ne.s32.totalorder %s77, %s78
    %p89 = scmp.eq.s32.totalorder %s17, 0
    %p90 = por %p88, %p89
    %p91 = scmp.ne.s32.totalorder %s77, %s78
    %p92 = scmp.eq.s32.totalorder %s18, 1
    %p93 = por %p91, %p92
    %p95 = scmp.ne.s32.totalorder %s78, %s94
    %p96 = scmp.eq.s32.totalorder %s18, 0
    %p97 = por %p95, %p96
    %s98 = ssub.s32 %s12, %s19
    %p99 = scmp.eq.s32.totalorder %s98, 0
    %s101 = sadd.s32 %s100, 1
    %s102 = scalar_select %p99, %s100, %s101
    %p105 = pneg %p99
    %p106 = scmp.eq.s32.totalorder %s12, 1
    %p107 = por %p105, %p106
    %p108 = scmp.ne.s32.totalorder %s100, %s103
    %p109 = scmp.eq.s32.totalorder %s12, 0
    %p110 = por %p108, %p109
    %p111 = scmp.ne.s32.totalorder %s100, %s103
    %p112 = scmp.eq.s32.totalorder %s17, 1
    %p113 = por %p111, %p112
    %p114 = scmp.ne.s32.totalorder %s103, %s104
    %p115 = scmp.eq.s32.totalorder %s17, 0
    %p116 = por %p114, %p115
    %p117 = scmp.ne.s32.totalorder %s103, %s104
    %p118 = scmp.eq.s32.totalorder %s18, 1
    %p119 = por %p117, %p118
    %p121 = scmp.ne.s32.totalorder %s104, %s120
    %p122 = scmp.eq.s32.totalorder %s18, 0
    %p123 = por %p121, %p122
    %s124 = ssub.s32 %s12, %s19
    %p125 = scmp.eq.s32.totalorder %s124, 0
    %s127 = sadd.s32 %s126, 1
    %s128 = scalar_select %p125, %s126, %s127
    %p131 = pneg %p125
    %p132 = scmp.eq.s32.totalorder %s12, 1
    %p133 = por %p131, %p132
    %p134 = scmp.ne.s32.totalorder %s126, %s129
    %p135 = scmp.eq.s32.totalorder %s12, 0
    %p136 = por %p134, %p135
    %p137 = scmp.ne.s32.totalorder %s126, %s129
    %p138 = scmp.eq.s32.totalorder %s17, 1
    %p139 = por %p137, %p138
    %p140 = scmp.ne.s32.totalorder %s129, %s130
    %p141 = scmp.eq.s32.totalorder %s17, 0
    %p142 = por %p140, %p141
    %p143 = scmp.ne.s32.totalorder %s129, %s130
    %p144 = scmp.eq.s32.totalorder %s18, 1
    %p145 = por %p143, %p144
    %p147 = scmp.ne.s32.totalorder %s130, %s146
    %p148 = scmp.eq.s32.totalorder %s18, 0
    %p149 = por %p147, %p148
    %s150 = ssub.s32 %s12, %s19
    %p151 = scmp.eq.s32.totalorder %s150, 0
    %s153 = sadd.s32 %s152, 1
    %s154 = scalar_select %p151, %s152, %s153
    %p157 = pneg %p151
    %p158 = scmp.eq.s32.totalorder %s12, 1
    %p159 = por %p157, %p158
    %p160 = scmp.ne.s32.totalorder %s152, %s155
    %p161 = scmp.eq.s32.totalorder %s12, 0
    %p162 = por %p160, %p161
    %p163 = scmp.ne.s32.totalorder %s152, %s155
    %p164 = scmp.eq.s32.totalorder %s17, 1
    %p165 = por %p163, %p164
    %p166 = scmp.ne.s32.totalorder %s155, %s156
    %p167 = scmp.eq.s32.totalorder %s17, 0
    %p168 = por %p166, %p167
    %p169 = scmp.ne.s32.totalorder %s155, %s156
    %p170 = scmp.eq.s32.totalorder %s18, 1
    %p171 = por %p169, %p170
    %p173 = scmp.ne.s32.totalorder %s156, %s172
    %p174 = scmp.eq.s32.totalorder %s18, 0
    %p175 = por %p173, %p174
    %p176 = scmp.le.s32.totalorder 1, %s12
    %p177 = scmp.lt.s32.totalorder %s12, 3
    %p178 = pnand %p176, %p177
    %p179 = pneg %p178
    // Predicated region
    $region9: #{lidar_loss.5} parent=5 // pred_check
      _
    $region10: #{lidar_loss.5} parent=5 // pred_check_branch
      %181 = sbr.rel (%p178) target = $region12
    $region11: #{lidar_loss.5} parent=5 // pred_region
      %s182 = ssub.s32 %s12, 1
    $region12: #{lidar_loss.5} parent=5 // pred_fallthru
      _
    %p183 = scmp.lt.s32.totalorder %s12, 2
    // Predicated region
    $region13: #{lidar_loss.5} parent=5 // pred_check
      %p184 = pneg %p183
    $region14: #{lidar_loss.5} parent=5 // pred_check_branch
      %186 = sbr.rel (%p184) target = $region16
    $region15: #{lidar_loss.5} parent=5 // pred_region
      // Predicated region
      $region17: #{lidar_loss.5} parent=15 // pred_check
        %p187 = pneg %p32
      $region18: #{lidar_loss.5} parent=15 // pred_check_branch
        %189 = sbr.rel (%p187) target = $region20
      $region19: #{lidar_loss.5} parent=15 // pred_region
        %s190 = smul.u32 8, %s12
        %s191 = ssub.s32 13, %s190
        %p192 = scmp.lt.s32.totalorder %s191, 8
        %s193 = scalar_select %p192, %s191, 8
        %s194 = smul.u32 128, %s193
        %p195 = scmp.lt.s32.totalorder %s190, 12
        %s196 = scalar_select %p195, %s190, 12
        %s197 = smul.addr %s196, 8
        %s198 = scalar_lea.vmem %s0, %s197
        %s199 = smul.u32 8, %s12
        %s200 = ssub.s32 13, %s199
        %p201 = scmp.lt.s32.totalorder %s200, 8
        %s202 = scalar_select %p201, %s200, 8
        %s203 = smul.u32 128, %s202
      $region20: #{lidar_loss.5} parent=15 // pred_fallthru
        _
      // Predicated region
      $region21: #{lidar_loss.5} parent=15 // pred_check
        %p204 = pneg %p58
      $region22: #{lidar_loss.5} parent=15 // pred_check_branch
        %206 = sbr.rel (%p204) target = $region24
      $region23: #{lidar_loss.5} parent=15 // pred_region
        %s207 = smul.u32 8, %s12
        %s208 = ssub.s32 13, %s207
        %p209 = scmp.lt.s32.totalorder %s208, 8
        %s210 = scalar_select %p209, %s208, 8
        %s211 = smul.u32 128, %s210
        %p212 = scmp.lt.s32.totalorder %s207, 12
        %s213 = scalar_select %p212, %s207, 12
        %s214 = smul.addr %s213, 8
        %s215 = scalar_lea.vmem %s1, %s214
        %s216 = smul.u32 8, %s12
        %s217 = ssub.s32 13, %s216
        %p218 = scmp.lt.s32.totalorder %s217, 8
        %s219 = scalar_select %p218, %s217, 8
        %s220 = smul.u32 128, %s219
      $region24: #{lidar_loss.5} parent=15 // pred_fallthru
        _
      // Predicated region
      $region25: #{lidar_loss.5} parent=15 // pred_check
        %p221 = pneg %p84
      $region26: #{lidar_loss.5} parent=15 // pred_check_branch
        %223 = sbr.rel (%p221) target = $region28
      $region27: #{lidar_loss.5} parent=15 // pred_region
        %s224 = smul.u32 8, %s12
        %s225 = ssub.s32 13, %s224
        %p226 = scmp.lt.s32.totalorder %s225, 8
        %s227 = scalar_select %p226, %s225, 8
        %s228 = smul.u32 128, %s227
        %p229 = scmp.lt.s32.totalorder %s224, 12
        %s230 = scalar_select %p229, %s224, 12
        %s231 = smul.addr %s230, 8
        %s232 = scalar_lea.vmem %s2, %s231
        %s233 = smul.u32 8, %s12
        %s234 = ssub.s32 13, %s233
        %p235 = scmp.lt.s32.totalorder %s234, 8
        %s236 = scalar_select %p235, %s234, 8
        %s237 = smul.u32 128, %s236
      $region28: #{lidar_loss.5} parent=15 // pred_fallthru
        _
      // Predicated region
      $region29: #{lidar_loss.5} parent=15 // pred_check
        %p238 = pneg %p110
      $region30: #{lidar_loss.5} parent=15 // pred_check_branch
        %240 = sbr.rel (%p238) target = $region32
      $region31: #{lidar_loss.5} parent=15 // pred_region
        %s241 = smul.u32 8, %s12
        %s242 = ssub.s32 13, %s241
        %p243 = scmp.lt.s32.totalorder %s242, 8
        %s244 = scalar_select %p243, %s242, 8
        %s245 = smul.u32 128, %s244
        %p246 = scmp.lt.s32.totalorder %s241, 12
        %s247 = scalar_select %p246, %s241, 12
        %s248 = smul.addr %s247, 8
        %s249 = scalar_lea.vmem %s3, %s248
        %s250 = smul.u32 8, %s12
        %s251 = ssub.s32 13, %s250
        %p252 = scmp.lt.s32.totalorder %s251, 8
        %s253 = scalar_select %p252, %s251, 8
        %s254 = smul.u32 128, %s253
      $region32: #{lidar_loss.5} parent=15 // pred_fallthru
        _
    $region16: #{lidar_loss.5} parent=5 // pred_fallthru
      _
    %p255 = scmp.le.s32.totalorder 1, %s12
    %p256 = scmp.lt.s32.totalorder %s12, 3
    %p257 = pnand %p255, %p256
    %p258 = pneg %p257
    // Predicated region
    $region33: #{lidar_loss.5} parent=5 // pred_check
      _
    $region34: #{lidar_loss.5} parent=5 // pred_check_branch
      %260 = sbr.rel (%p257) target = $region36
    $region35: #{lidar_loss.5} parent=5 // pred_region
      %s261 = ssub.s32 %s12, 1
      %s262 = smul.u32 8, %s17
      %s263 = ssub.s32 13, %s262
      %p264 = scmp.lt.s32.totalorder %s263, 8
      %s265 = scalar_select %p264, %s263, 8
      %s266 = smul.u32 128, %s265
      %p267 = scmp.lt.s32.totalorder %s262, 12
      %s268 = scalar_select %p267, %s262, 12
      %s269 = smul.addr %s268, 8
      %s270 = scalar_lea.vmem %s0, %s269
      %p271 = pneg %p38
      %p272 = pneg %p35
      %s273 = smul.u32 8, %s17
      %s274 = ssub.s32 13, %s273
      %p275 = scmp.lt.s32.totalorder %s274, 8
      %s276 = scalar_select %p275, %s274, 8
      %s277 = smul.u32 128, %s276
      %p278 = scmp.lt.s32.totalorder %s273, 12
      %s279 = scalar_select %p278, %s273, 12
      %s280 = smul.addr %s279, 8
      %s281 = scalar_lea.vmem %s1, %s280
      %p282 = pneg %p64
      %p283 = pneg %p61
      %s284 = smul.u32 8, %s17
      %s285 = ssub.s32 13, %s284
      %p286 = scmp.lt.s32.totalorder %s285, 8
      %s287 = scalar_select %p286, %s285, 8
      %s288 = smul.u32 128, %s287
      %p289 = scmp.lt.s32.totalorder %s284, 12
      %s290 = scalar_select %p289, %s284, 12
      %s291 = smul.addr %s290, 8
      %s292 = scalar_lea.vmem %s2, %s291
      %p293 = pneg %p90
      %p294 = pneg %p87
      %s295 = smul.u32 8, %s17
      %s296 = ssub.s32 13, %s295
      %p297 = scmp.lt.s32.totalorder %s296, 8
      %s298 = scalar_select %p297, %s296, 8
      %s299 = smul.u32 128, %s298
      %p300 = scmp.lt.s32.totalorder %s295, 12
      %s301 = scalar_select %p300, %s295, 12
      %s302 = smul.addr %s301, 8
      %s303 = scalar_lea.vmem %s3, %s302
      %p304 = pneg %p116
      %p305 = pneg %p113
      %p306 = pneg %p142
      %p307 = pneg %p139
      %p308 = scmp.lt.s32.totalorder %s17, 1
      %s309 = scalar_select %p308, %s17, 1
      %s310 = smul.addr %s309, 8
      %s311 = scalar_lea.vmem %s4, %s310
      %p312 = pneg %p168
      %p313 = pneg %p165
      %p314 = scmp.lt.s32.totalorder %s17, 1
      %s315 = scalar_select %p314, %s17, 1
      %s316 = smul.addr %s315, 8
      %s317 = scalar_lea.vmem %s5, %s316
      %s318 = smul.u32 8, %s17
      %s319 = ssub.s32 13, %s318
      %p320 = scmp.lt.s32.totalorder %s319, 8
      %s321 = scalar_select %p320, %s319, 8
      %s322 = smul.u32 128, %s321
      %p323 = scmp.lt.s32.totalorder %s318, 12
      %s324 = scalar_select %p323, %s318, 12
      %s325 = smul.addr %s324, 8
      %s326 = scalar_lea.vmem %s0, %s325
      %s327 = smul.u32 8, %s17
      %s328 = ssub.s32 13, %s327
      %p329 = scmp.lt.s32.totalorder %s328, 8
      %s330 = scalar_select %p329, %s328, 8
      %s331 = smul.u32 128, %s330
      %s332 = smul.u32 8, %s17
      %s333 = ssub.s32 13, %s332
      %p334 = scmp.lt.s32.totalorder %s333, 8
      %s335 = scalar_select %p334, %s333, 8
      %s336 = smul.u32 128, %s335
      %p337 = scmp.lt.s32.totalorder %s332, 12
      %s338 = scalar_select %p337, %s332, 12
      %s339 = smul.addr %s338, 8
      %s340 = scalar_lea.vmem %s1, %s339
      %s341 = smul.u32 8, %s17
      %s342 = ssub.s32 13, %s341
      %p343 = scmp.lt.s32.totalorder %s342, 8
      %s344 = scalar_select %p343, %s342, 8
      %s345 = smul.u32 128, %s344
      %s346 = smul.u32 8, %s17
      %s347 = ssub.s32 13, %s346
      %p348 = scmp.lt.s32.totalorder %s347, 8
      %s349 = scalar_select %p348, %s347, 8
      %s350 = smul.u32 128, %s349
      %p351 = scmp.lt.s32.totalorder %s346, 12
      %s352 = scalar_select %p351, %s346, 12
      %s353 = smul.addr %s352, 8
      %s354 = scalar_lea.vmem %s2, %s353
      %s355 = smul.u32 8, %s17
      %s356 = ssub.s32 13, %s355
      %p357 = scmp.lt.s32.totalorder %s356, 8
      %s358 = scalar_select %p357, %s356, 8
      %s359 = smul.u32 128, %s358
      %s360 = smul.u32 8, %s17
      %s361 = ssub.s32 13, %s360
      %p362 = scmp.lt.s32.totalorder %s361, 8
      %s363 = scalar_select %p362, %s361, 8
      %s364 = smul.u32 128, %s363
      %p365 = scmp.lt.s32.totalorder %s360, 12
      %s366 = scalar_select %p365, %s360, 12
      %s367 = smul.addr %s366, 8
      %s368 = scalar_lea.vmem %s3, %s367
      %s369 = smul.u32 8, %s17
      %s370 = ssub.s32 13, %s369
      %p371 = scmp.lt.s32.totalorder %s370, 8
      %s372 = scalar_select %p371, %s370, 8
      %s373 = smul.u32 128, %s372
      %p374 = scmp.lt.s32.totalorder %s17, 1
      %s375 = scalar_select %p374, %s17, 1
      %s376 = smul.addr %s375, 8
      %s377 = scalar_lea.vmem %s4, %s376
      %p378 = scmp.lt.s32.totalorder %s17, 1
      %s379 = scalar_select %p378, %s17, 1
      %s380 = smul.addr %s379, 8
      %s381 = scalar_lea.vmem %s5, %s380
      %v382 = vld [vmem:[%s326] sm:$0xff]
      %v383 = vld [vmem:[%s326 + $0x8] sm:$0xff]
      %v384 = vld [vmem:[%s326 + $0x10] sm:$0xff]
      %v385 = vld [vmem:[%s326 + $0x18] sm:$0xff]
      %v386 = vld [vmem:[%s326 + $0x20] sm:$0xff]
      %v387 = vld [vmem:[%s326 + $0x28] sm:$0xff]
      %v388 = vld [vmem:[%s326 + $0x30] sm:$0xff]
      %v389 = vld [vmem:[%s326 + $0x38] sm:$0xff]
      %v390 = vld [vmem:[%s340] sm:$0xff]
      %v391 = vld [vmem:[%s340 + $0x8] sm:$0xff]
      %v392 = vld [vmem:[%s340 + $0x10] sm:$0xff]
      %v393 = vld [vmem:[%s340 + $0x18] sm:$0xff]
      %v394 = vld [vmem:[%s340 + $0x20] sm:$0xff]
      %v395 = vld [vmem:[%s340 + $0x28] sm:$0xff]
      %v396 = vld [vmem:[%s340 + $0x30] sm:$0xff]
      %v397 = vld [vmem:[%s340 + $0x38] sm:$0xff]
      %v398 = vld [vmem:[%s354] sm:$0xff]
      %v399 = vld [vmem:[%s354 + $0x8] sm:$0xff]
      %v400 = vld [vmem:[%s354 + $0x10] sm:$0xff]
      %v401 = vld [vmem:[%s354 + $0x18] sm:$0xff]
      %v402 = vld [vmem:[%s354 + $0x20] sm:$0xff]
      %v403 = vld [vmem:[%s354 + $0x28] sm:$0xff]
      %v404 = vld [vmem:[%s354 + $0x30] sm:$0xff]
      %v405 = vld [vmem:[%s354 + $0x38] sm:$0xff]
      %v406 = vld [vmem:[%s368] sm:$0xff]
      %v407 = vld [vmem:[%s368 + $0x8] sm:$0xff]
      %v408 = vld [vmem:[%s368 + $0x10] sm:$0xff]
      %v409 = vld [vmem:[%s368 + $0x18] sm:$0xff]
      %v410 = vld [vmem:[%s368 + $0x20] sm:$0xff]
      %v411 = vld [vmem:[%s368 + $0x28] sm:$0xff]
      %v412 = vld [vmem:[%s368 + $0x30] sm:$0xff]
      %v413 = vld [vmem:[%s368 + $0x38] sm:$0xff]
      %415 = vset.pattern.permute.xlu0 0
      %416 = vperm.xlu0 %415, %v398
      %v417 = vpop.permute.xlu0 %416
      %420 = vset.pattern.permute.xlu0 0
      %421 = vperm.xlu0 %420, %v399
      %v422 = vpop.permute.xlu0 %421
      %425 = vset.pattern.permute.xlu0 0
      %426 = vperm.xlu0 %425, %v400
      %v427 = vpop.permute.xlu0 %426
      %430 = vset.pattern.permute.xlu0 0
      %431 = vperm.xlu0 %430, %v401
      %v432 = vpop.permute.xlu0 %431
      %435 = vset.pattern.permute.xlu0 0
      %436 = vperm.xlu0 %435, %v402
      %v437 = vpop.permute.xlu0 %436
      %440 = vset.pattern.permute.xlu0 0
      %441 = vperm.xlu0 %440, %v403
      %v442 = vpop.permute.xlu0 %441
      %445 = vset.pattern.permute.xlu0 0
      %446 = vperm.xlu0 %445, %v404
      %v447 = vpop.permute.xlu0 %446
      %450 = vset.pattern.permute.xlu0 0
      %451 = vperm.xlu0 %450, %v405
      %v452 = vpop.permute.xlu0 %451
      %v454 = vsub.f32 %v382, %v417
      %v455 = vsub.f32 %v383, %v422
      %v456 = vsub.f32 %v384, %v427
      %v457 = vsub.f32 %v385, %v432
      %v458 = vsub.f32 %v386, %v437
      %v459 = vsub.f32 %v387, %v442
      %v460 = vsub.f32 %v388, %v447
      %v461 = vsub.f32 %v389, %v452
      %v462 = vmul.f32 %v454, 3.0
      %v463 = vmul.f32 %v455, 3.0
      %v464 = vmul.f32 %v456, 3.0
      %v465 = vmul.f32 %v457, 3.0
      %v466 = vmul.f32 %v458, 3.0
      %v467 = vmul.f32 %v459, 3.0
      %v468 = vmul.f32 %v460, 3.0
      %v469 = vmul.f32 %v461, 3.0
      %v470 = vmul.f32 %v462, -0.5
      %v471 = vmul.f32 %v463, -0.5
      %v472 = vmul.f32 %v464, -0.5
      %v473 = vmul.f32 %v465, -0.5
      %v474 = vmul.f32 %v466, -0.5
      %v475 = vmul.f32 %v467, -0.5
      %v476 = vmul.f32 %v468, -0.5
      %v477 = vmul.f32 %v469, -0.5
      %v478 = vmul.f32 %v470, %v462
      %v479 = vmul.f32 %v471, %v463
      %v480 = vmul.f32 %v472, %v464
      %v481 = vmul.f32 %v473, %v465
      %v482 = vmul.f32 %v474, %v466
      %v483 = vmul.f32 %v475, %v467
      %v484 = vmul.f32 %v476, %v468
      %v485 = vmul.f32 %v477, %v469
      %v486 = vmul.f32 %v478, 1.442695
      %v487 = vpow.pop %v486
      %v488 = vmul.f32 %v479, 1.442695
      %v489 = vpow.pop %v488
      %v490 = vmul.f32 %v480, 1.442695
      %v491 = vpow.pop %v490
      %v492 = vmul.f32 %v481, 1.442695
      %v493 = vpow.pop %v492
      %v494 = vmul.f32 %v482, 1.442695
      %v495 = vpow.pop %v494
      %v496 = vmul.f32 %v483, 1.442695
      %v497 = vpow.pop %v496
      %v498 = vmul.f32 %v484, 1.442695
      %v499 = vpow.pop %v498
      %v500 = vmul.f32 %v485, 1.442695
      %v501 = vpow.pop %v500
      %v502 = vmul.f32 %v487, 1.1968268
      %v503 = vmul.f32 %v489, 1.1968268
      %v504 = vmul.f32 %v491, 1.1968268
      %v505 = vmul.f32 %v493, 1.1968268
      %v506 = vmul.f32 %v495, 1.1968268
      %v507 = vmul.f32 %v497, 1.1968268
      %v508 = vmul.f32 %v499, 1.1968268
      %v509 = vmul.f32 %v501, 1.1968268
      %511 = vset.pattern.permute.xlu0 0
      %512 = vperm.xlu0 %511, %v406
      %v513 = vpop.permute.xlu0 %512
      %516 = vset.pattern.permute.xlu0 0
      %517 = vperm.xlu0 %516, %v407
      %v518 = vpop.permute.xlu0 %517
      %521 = vset.pattern.permute.xlu0 0
      %522 = vperm.xlu0 %521, %v408
      %v523 = vpop.permute.xlu0 %522
      %526 = vset.pattern.permute.xlu0 0
      %527 = vperm.xlu0 %526, %v409
      %v528 = vpop.permute.xlu0 %527
      %531 = vset.pattern.permute.xlu0 0
      %532 = vperm.xlu0 %531, %v410
      %v533 = vpop.permute.xlu0 %532
      %536 = vset.pattern.permute.xlu0 0
      %537 = vperm.xlu0 %536, %v411
      %v538 = vpop.permute.xlu0 %537
      %541 = vset.pattern.permute.xlu0 0
      %542 = vperm.xlu0 %541, %v412
      %v543 = vpop.permute.xlu0 %542
      %546 = vset.pattern.permute.xlu0 0
      %547 = vperm.xlu0 %546, %v413
      %v548 = vpop.permute.xlu0 %547
      %v550 = vand.u32 2147483647, %v454
      %v551 = vand.u32 2147483647, %v455
      %v552 = vand.u32 2147483647, %v456
      %v553 = vand.u32 2147483647, %v457
      %v554 = vand.u32 2147483647, %v458
      %v555 = vand.u32 2147483647, %v459
      %v556 = vand.u32 2147483647, %v460
      %v557 = vand.u32 2147483647, %v461
      %vm558 = vcmp.le.f32.partialorder %v550, 1.0
      %vm559 = vcmp.le.f32.partialorder %v551, 1.0
      %vm560 = vcmp.le.f32.partialorder %v552, 1.0
      %vm561 = vcmp.le.f32.partialorder %v553, 1.0
      %vm562 = vcmp.le.f32.partialorder %v554, 1.0
      %vm563 = vcmp.le.f32.partialorder %v555, 1.0
      %vm564 = vcmp.le.f32.partialorder %v556, 1.0
      %vm565 = vcmp.le.f32.partialorder %v557, 1.0
      %v566 = vsub.f32 %v390, %v502
      %v567 = vsub.f32 %v391, %v503
      %v568 = vsub.f32 %v392, %v504
      %v569 = vsub.f32 %v393, %v505
      %v570 = vsub.f32 %v394, %v506
      %v571 = vsub.f32 %v395, %v507
      %v572 = vsub.f32 %v396, %v508
      %v573 = vsub.f32 %v397, %v509
      %v574 = vmul.f32 %v566, %v566
      %v575 = vmul.f32 %v567, %v567
      %v576 = vmul.f32 %v568, %v568
      %v577 = vmul.f32 %v569, %v569
      %v578 = vmul.f32 %v570, %v570
      %v579 = vmul.f32 %v571, %v571
      %v580 = vmul.f32 %v572, %v572
      %v581 = vmul.f32 %v573, %v573
      %v582 = vsel %vm558, %v574, 0.0
      %v583 = vsel %vm559, %v575, 0.0
      %v584 = vsel %vm560, %v576, 0.0
      %v585 = vsel %vm561, %v577, 0.0
      %v586 = vsel %vm562, %v578, 0.0
      %v587 = vsel %vm563, %v579, 0.0
      %v588 = vsel %vm564, %v580, 0.0
      %v589 = vsel %vm565, %v581, 0.0
      %v590 = vmul.f32 %v582, %v513
      %v591 = vmul.f32 %v583, %v518
      %v592 = vmul.f32 %v584, %v523
      %v593 = vmul.f32 %v585, %v528
      %v594 = vmul.f32 %v586, %v533
      %v595 = vmul.f32 %v587, %v538
      %v596 = vmul.f32 %v588, %v543
      %v597 = vmul.f32 %v589, %v548
      %vm598 = vcmp.lt.f32.partialorder %v454, -1.0
      %vm599 = vcmp.lt.f32.partialorder %v455, -1.0
      %vm600 = vcmp.lt.f32.partialorder %v456, -1.0
      %vm601 = vcmp.lt.f32.partialorder %v457, -1.0
      %vm602 = vcmp.lt.f32.partialorder %v458, -1.0
      %vm603 = vcmp.lt.f32.partialorder %v459, -1.0
      %vm604 = vcmp.lt.f32.partialorder %v460, -1.0
      %vm605 = vcmp.lt.f32.partialorder %v461, -1.0
      %v606 = vmul.f32 %v390, %v390
      %v607 = vmul.f32 %v391, %v391
      %v608 = vmul.f32 %v392, %v392
      %v609 = vmul.f32 %v393, %v393
      %v610 = vmul.f32 %v394, %v394
      %v611 = vmul.f32 %v395, %v395
      %v612 = vmul.f32 %v396, %v396
      %v613 = vmul.f32 %v397, %v397
      %v614 = vsel %vm598, %v606, 0.0
      %v615 = vsel %vm599, %v607, 0.0
      %v616 = vsel %vm600, %v608, 0.0
      %v617 = vsel %vm601, %v609, 0.0
      %v618 = vsel %vm602, %v610, 0.0
      %v619 = vsel %vm603, %v611, 0.0
      %v620 = vsel %vm604, %v612, 0.0
      %v621 = vsel %vm605, %v613, 0.0
      %v622 = vmul.f32 %v614, %v513
      %v623 = vmul.f32 %v615, %v518
      %v624 = vmul.f32 %v616, %v523
      %v625 = vmul.f32 %v617, %v528
      %v626 = vmul.f32 %v618, %v533
      %v627 = vmul.f32 %v619, %v538
      %v628 = vmul.f32 %v620, %v543
      %v629 = vmul.f32 %v621, %v548
      %v630 = vlaneseq
      %v631 = vshrl.u32 %v630, 7
      %v632 = vadd.s32 %v631, 8
      %v633 = vadd.s32 %v631, 16
      %v634 = vadd.s32 %v631, 24
      %v635 = vadd.s32 %v631, 32
      %v636 = vadd.s32 %v631, 40
      %v637 = vadd.s32 %v631, 48
      %v638 = vadd.s32 %v631, 56
      %s639 = smul.u32 %s17, 64
      %v640 = vstv %s639
      %v641 = vadd.s32 %v631, %v640
      %v642 = vadd.s32 %v632, %v640
      %v643 = vadd.s32 %v633, %v640
      %v644 = vadd.s32 %v634, %v640
      %v645 = vadd.s32 %v635, %v640
      %v646 = vadd.s32 %v636, %v640
      %v647 = vadd.s32 %v637, %v640
      %v648 = vadd.s32 %v638, %v640
      %vm649 = vcmp.lt.s32.totalorder %v641, 100
      %vm650 = vcmp.lt.s32.totalorder %v642, 100
      %vm651 = vcmp.lt.s32.totalorder %v643, 100
      %vm652 = vcmp.lt.s32.totalorder %v644, 100
      %vm653 = vcmp.lt.s32.totalorder %v645, 100
      %vm654 = vcmp.lt.s32.totalorder %v646, 100
      %vm655 = vcmp.lt.s32.totalorder %v647, 100
      %vm656 = vcmp.lt.s32.totalorder %v648, 100
      %v657 = vsel %vm649, %v590, 0.0
      %v658 = vsel %vm650, %v591, 0.0
      %v659 = vsel %vm651, %v592, 0.0
      %v660 = vsel %vm652, %v593, 0.0
      %v661 = vsel %vm653, %v594, 0.0
      %v662 = vsel %vm654, %v595, 0.0
      %v663 = vsel %vm655, %v596, 0.0
      %v664 = vsel %vm656, %v597, 0.0
      %v665 = vsel %vm649, %v622, 0.0
      %v666 = vsel %vm650, %v623, 0.0
      %v667 = vsel %vm651, %v624, 0.0
      %v668 = vsel %vm652, %v625, 0.0
      %v669 = vsel %vm653, %v626, 0.0
      %v670 = vsel %vm654, %v627, 0.0
      %v671 = vsel %vm655, %v628, 0.0
      %v672 = vsel %vm656, %v629, 0.0
      %v673 = vadd.f32 %v657, %v658
      %v674 = vadd.f32 %v673, %v659
      %v675 = vadd.f32 %v674, %v660
      %v676 = vadd.f32 %v675, %v661
      %v677 = vadd.f32 %v676, %v662
      %v678 = vadd.f32 %v677, %v663
      %v679 = vadd.f32 %v678, %v664
      %v680 = vrot.slane %v679, 4
      %v681 = vadd.f32 %v679, %v680
      %v682 = vrot.slane %v681, 2
      %v683 = vadd.f32 %v681, %v682
      %v684 = vrot.slane %v683, 1
      %v685 = vadd.f32 %v683, %v684
      %686 = vst [vmem:[%s377] sm:$0xff] %v685
      %v687 = vadd.f32 %v665, %v666
      %v688 = vadd.f32 %v687, %v667
      %v689 = vadd.f32 %v688, %v668
      %v690 = vadd.f32 %v689, %v669
      %v691 = vadd.f32 %v690, %v670
      %v692 = vadd.f32 %v691, %v671
      %v693 = vadd.f32 %v692, %v672
      %v694 = vrot.slane %v693, 4
      %v695 = vadd.f32 %v693, %v694
      %v696 = vrot.slane %v695, 2
      %v697 = vadd.f32 %v695, %v696
      %v698 = vrot.slane %v697, 1
      %v699 = vadd.f32 %v697, %v698
      %700 = vst [vmem:[%s381] sm:$0xff] %v699
      %p701 = scmp.lt.s32.totalorder %s17, 1
      %s702 = scalar_select %p701, %s17, 1
      %s703 = smul.addr %s702, 8
      %s704 = scalar_lea.vmem %s4, %s703
      %p705 = scmp.lt.s32.totalorder %s17, 1
      %s706 = scalar_select %p705, %s17, 1
      %s707 = smul.addr %s706, 8
      %s708 = scalar_lea.vmem %s5, %s707
      // Predicated region
      $region37: #{lidar_loss.5} parent=35 // pred_check
        %p709 = pneg %p139
      $region38: #{lidar_loss.5} parent=35 // pred_check_branch
        %711 = sbr.rel (%p709) target = $region40
      $region39: #{lidar_loss.5} parent=35 // pred_region
        _
      $region40: #{lidar_loss.5} parent=35 // pred_fallthru
        _
      // Predicated region
      $region41: #{lidar_loss.5} parent=35 // pred_check
        %p712 = pneg %p165
      $region42: #{lidar_loss.5} parent=35 // pred_check_branch
        %714 = sbr.rel (%p712) target = $region44
      $region43: #{lidar_loss.5} parent=35 // pred_region
        _
      $region44: #{lidar_loss.5} parent=35 // pred_fallthru
        _
    $region36: #{lidar_loss.5} parent=5 // pred_fallthru
      _
    %p715 = scmp.le.s32.totalorder 2, %s12
    // Predicated region
    $region45: #{lidar_loss.5} parent=5 // pred_check
      %p716 = pneg %p715
    $region46: #{lidar_loss.5} parent=5 // pred_check_branch
      %718 = sbr.rel (%p716) target = $region48
    $region47: #{lidar_loss.5} parent=5 // pred_region
      %s719 = ssub.s32 %s12, 2
      // Predicated region
      $region49: #{lidar_loss.5} parent=47 // pred_check
        %p720 = pneg %p145
      $region50: #{lidar_loss.5} parent=47 // pred_check_branch
        %722 = sbr.rel (%p720) target = $region52
      $region51: #{lidar_loss.5} parent=47 // pred_region
        %p723 = scmp.lt.s32.totalorder %s18, 1
        %s724 = scalar_select %p723, %s18, 1
        %s725 = smul.addr %s724, 8
        %s726 = scalar_lea.vmem %s4, %s725
      $region52: #{lidar_loss.5} parent=47 // pred_fallthru
        _
      // Predicated region
      $region53: #{lidar_loss.5} parent=47 // pred_check
        %p727 = pneg %p171
      $region54: #{lidar_loss.5} parent=47 // pred_check_branch
        %729 = sbr.rel (%p727) target = $region56
      $region55: #{lidar_loss.5} parent=47 // pred_region
        %p730 = scmp.lt.s32.totalorder %s18, 1
        %s731 = scalar_select %p730, %s18, 1
        %s732 = smul.addr %s731, 8
        %s733 = scalar_lea.vmem %s5, %s732
      $region56: #{lidar_loss.5} parent=47 // pred_fallthru
        _
    $region48: #{lidar_loss.5} parent=5 // pred_fallthru
      _
  $region6: #{lidar_loss.5} parent=0 // loop_footer
    %s16 = sadd.s32 1, %s12
  $region7: #{lidar_loss.5} parent=0 // loop_footer_branch
    %11 = sbr.rel target = $region3
  $region8: #{lidar_loss.5} parent=0 // loop_exit
    _

</llo_original>
